<compile_context>
chip_gen: v5e
topology: v5e:2x2
jax: 0.10.0
libtpu: 0.0.40
codegen_flags: <defaults>
</compile_context>

<pallas_src>
import numpy as np
import jax
import jax.numpy as jnp
from jax.experimental import pallas as pl
from jax.experimental.pallas import tpu as pltpu

POOL_SIZES = (1, 2, 3, 6)
S_TOT = sum(POOL_SIZES)                       # 12 stacked pooled rows (1-D)
S2_TOT = sum(s * s for s in POOL_SIZES)       # 50 stacked pooled pixels (2-D)
_OFFS = np.cumsum([0] + [s * s for s in POOL_SIZES]).tolist()   # [0,1,5,14,50]


# ---------------------- pooling / interpolation matrices ----------------------

def _pool_matrix_1d(L, s):
    """(s, L) adaptive-average-pool matrix (PyTorch AdaptiveAvgPool bins)."""
    P = np.zeros((s, L), np.float32)
    for i in range(s):
        a = (i * L) // s
        b = -((-(i + 1) * L) // s)            # ceil((i+1)*L/s)
        P[i, a:b] = 1.0 / (b - a)
    return P


def _stacked_pool_matrix(H, W):
    """(S2_TOT, H*W): all four 2-D adaptive pools as one stacked matrix."""
    mats = [np.kron(_pool_matrix_1d(H, s), _pool_matrix_1d(W, s))
            for s in POOL_SIZES]
    return np.concatenate(mats, axis=0)


def _upsample_matrix_1d(L, s):
    """(L, s) 1-D bilinear interpolation matrix, align_corners=True."""
    U = np.zeros((L, s), np.float32)
    if s == 1:
        U[:, 0] = 1.0
        return U
    scale = (s - 1) / (L - 1)
    for h in range(L):
        src = h * scale
        i0 = min(int(np.floor(src)), s - 1)
        i1 = min(i0 + 1, s - 1)
        f = src - i0
        U[h, i0] += 1.0 - f
        U[h, i1] += f
    return U


# ------------------------------- Pallas kernels --------------------------------

def _pool_kernel(pt_ref, x_ref, o_ref):
    # pt_ref: (S2_TOT, TH*W) bf16  columns of the stacked pooling matrix
    # x_ref : (1, TH*W, Cin) bf16  row tile of the flattened NHWC image
    # o_ref : (1, S2_TOT, Cin) f32 accumulator, resident across the row-tile axis
    @pl.when(pl.program_id(1) == 0)
    def _init():
        o_ref[...] = jnp.zeros_like(o_ref)

    o_ref[0] += jnp.dot(pt_ref[...], x_ref[0],
                        preferred_element_type=jnp.float32)


def _ppm_out_kernel(x_ref, wx_ref, a_ref, t_ref, s_ref, b_ref, o_ref):
    # Fused: 1x1 out-conv (x slice of the concat, MXU) + bilinear row-upsample
    # of the (already col-upsampled, out-projected) pyramid branches + folded BN
    # + ReLU.  One (batch, row-tile) block per program; lane-dense Cout stores.
    _, th, w, cout = o_ref.shape
    z = jnp.dot(x_ref[0], wx_ref[...],
                preferred_element_type=jnp.float32)        # (th*w, cout) f32
    z = z.reshape(th, w, cout)
    a = a_ref[...]            # (th, S_TOT, cout) row-interp weights (this tile)
    t = t_ref[0]              # (S_TOT, w, cout)  per-image branch rows
    for i in range(S_TOT):    # 12 broadcast-FMA taps on the VPU
        z = z + a[:, i:i + 1, :] * t[i:i + 1]
    z = z * s_ref[...] + b_ref[...]                        # folded BN (out conv)
    o_ref[0] = jnp.maximum(z, 0.0)                         # ReLU


# ---------------------------------- wrapper ------------------------------------

def pyramid_pooling_forward(x_nchw, params):
    N, Cin, H, W = x_nchw.shape
    Cout = params["w_out"].shape[1]
    inter = Cin // 4

    # Row tile: keep (8,128) block rules happy; fall back to full image rows.
    TH = 8 if (H % 8 == 0 and (8 * W) % 128 == 0) else H
    R = H // TH

    # NHWC with channels on the lane axis; bf16 activations halve HBM reads and
    # run the MXU at its bf16 rate (accumulation stays f32).
    x = jnp.transpose(x_nchw, (0, 2, 3, 1)).astype(jnp.float32)
    x2 = x.reshape(N, H * W, Cin).astype(jnp.bfloat16)

    # ---- Pallas kernel 1: all four adaptive average pools in one matmul ------
    pt = jnp.asarray(_stacked_pool_matrix(H, W), jnp.bfloat16)      # (50, H*W)
    pooled = pl.pallas_call(
        _pool_kernel,
        out_shape=jax.ShapeDtypeStruct((N, S2_TOT, Cin), jnp.float32),
        grid=(N, R),
        in_specs=[
            pl.BlockSpec((S2_TOT, TH * W), lambda n, r: (0, r)),
            pl.BlockSpec((1, TH * W, Cin), lambda n, r: (n, r, 0)),
        ],
        out_specs=pl.BlockSpec((1, S2_TOT, Cin), lambda n, r: (n, 0, 0)),
        compiler_params=pltpu.CompilerParams(
            dimension_semantics=("parallel", "arbitrary")),
    )(pt, x2)                                                       # (N,50,Cin)

    # ---- tiny pooled-grid math (<= 6x6 pixels): plain-JAX glue ----------------
    # 1x1 conv + folded BN + ReLU per branch, projection through the matching
    # slice of the out-conv weight, and column interpolation.  All sub-tile.
    t_rows, a_rows = [], []
    for k, s in enumerate(POOL_SIZES):
        pk = pooled[:, _OFFS[k]:_OFFS[k + 1], :]                    # (N,s*s,Cin)
        g = jnp.einsum("npc,ce->npe", pk, params["w_br"][k])
        g = jnp.maximum(g * params["s_br"][k] + params["b_br"][k], 0.0)
        w_out_k = params["w_out"][Cin + k * inter:Cin + (k + 1) * inter]
        hk = jnp.einsum("npe,eo->npo", g, w_out_k).reshape(N, s, s, Cout)
        ucol = jnp.asarray(_upsample_matrix_1d(W, s))               # (W, s)
        t_rows.append(jnp.einsum("wj,nijo->niwo", ucol, hk))        # (N,s,W,Cout)
        a_rows.append(jnp.asarray(_upsample_matrix_1d(H, s)))       # (H, s)
    t_all = jnp.concatenate(t_rows, axis=1).astype(jnp.float32)     # (N,12,W,Cout)
    a_all = jnp.concatenate(a_rows, axis=1)                         # (H, 12)
    a3 = jnp.broadcast_to(a_all[:, :, None],
                          (H, S_TOT, Cout)).astype(jnp.float32)     # (H,12,Cout)

    w_x = params["w_out"][:Cin].astype(jnp.bfloat16)                # (Cin, Cout)

    # ---- Pallas kernel 2: fused out-conv + row-upsample + BN + ReLU -----------
    out = pl.pallas_call(
        _ppm_out_kernel,
        out_shape=jax.ShapeDtypeStruct((N, H, W, Cout), jnp.float32),
        grid=(N, R),
        in_specs=[
            pl.BlockSpec((1, TH * W, Cin), lambda n, r: (n, r, 0)),
            pl.BlockSpec((Cin, Cout), lambda n, r: (0, 0)),
            pl.BlockSpec((TH, S_TOT, Cout), lambda n, r: (r, 0, 0)),
            pl.BlockSpec((1, S_TOT, W, Cout), lambda n, r: (n, 0, 0, 0)),
            pl.BlockSpec((1, Cout), lambda n, r: (0, 0)),
            pl.BlockSpec((1, Cout), lambda n, r: (0, 0)),
        ],
        out_specs=pl.BlockSpec((1, TH, W, Cout), lambda n, r: (n, r, 0, 0)),
        compiler_params=pltpu.CompilerParams(
            dimension_semantics=("parallel", "parallel")),
    )(x2, w_x, a3, t_all, params["s_out"], params["b_out"])

    return jnp.transpose(out, (0, 3, 1, 2))                         # NCHW


# ---------------------------- params / pure-JAX reference ----------------------

def _fold_bn(gamma, beta, mean, var, eps=1e-5):
    s = gamma / jnp.sqrt(var + eps)
    b = beta - mean * s
    return (s.reshape(1, -1).astype(jnp.float32),
            b.reshape(1, -1).astype(jnp.float32))


def init_params(key, cin, cout):
    inter = cin // 4
    k = jax.random.split(key, 25)

    def bn(k4, c):
        gamma = 1.0 + 0.1 * jax.random.normal(k4[0], (c,), jnp.float32)
        beta = 0.1 * jax.random.normal(k4[1], (c,), jnp.float32)
        mean = 0.1 * jax.random.normal(k4[2], (c,), jnp.float32)
        var = jax.random.uniform(k4[3], (c,), jnp.float32, minval=0.5, maxval=1.5)
        return _fold_bn(gamma, beta, mean, var)

    w_br, s_br, b_br = [], [], []
    for i in range(4):
        kk = k[5 * i:5 * i + 5]
        w_br.append(0.1 * jax.random.normal(kk[0], (cin, inter), jnp.float32))
        s, b = bn(kk[1:5], inter)
        s_br.append(s)
        b_br.append(b)
    kk = k[20:25]
    w_out = 0.1 * jax.random.normal(kk[0], (2 * cin, cout), jnp.float32)
    s_out, b_out = bn(kk[1:5], cout)
    return dict(w_br=w_br, s_br=s_br, b_br=b_br,
                w_out=w_out, s_out=s_out, b_out=b_out)


def _adaptive_pool_ref(x, s):
    N, H, W, C = x.shape
    rows = []
    for i in range(s):
        r0, r1 = (i * H) // s, -((-(i + 1) * H) // s)
        cols = []
        for j in range(s):
            c0, c1 = (j * W) // s, -((-(j + 1) * W) // s)
            cols.append(jnp.mean(x[:, r0:r1, c0:c1, :], axis=(1, 2)))
        rows.append(jnp.stack(cols, axis=1))
    return jnp.stack(rows, axis=1)                                   # (N,s,s,C)


def _upsample_ref(g, H, W):
    # bilinear, align_corners=True, from (s, s) to (H, W)
    N, s, _, C = g.shape

    def idx(L):
        if s == 1:
            z = jnp.zeros((L,), jnp.int32)
            return z, z, jnp.zeros((L,), jnp.float32)
        src = jnp.arange(L, dtype=jnp.float32) * (s - 1) / (L - 1)
        i0 = jnp.floor(src).astype(jnp.int32)
        i1 = jnp.minimum(i0 + 1, s - 1)
        return i0, i1, src - i0.astype(jnp.float32)

    h0, h1, hf = idx(H)
    w0, w1, wf = idx(W)
    hf = hf[None, :, None, None]
    wf = wf[None, None, :, None]
    g00 = g[:, h0][:, :, w0]
    g01 = g[:, h0][:, :, w1]
    g10 = g[:, h1][:, :, w0]
    g11 = g[:, h1][:, :, w1]
    top = g00 * (1.0 - wf) + g01 * wf
    bot = g10 * (1.0 - wf) + g11 * wf
    return top * (1.0 - hf) + bot * hf


def reference(x_nchw, params):
    x = jnp.transpose(x_nchw, (0, 2, 3, 1)).astype(jnp.float32)
    N, H, W, Cin = x.shape
    feats = [x]
    for k, s in enumerate(POOL_SIZES):
        pooled = _adaptive_pool_ref(x, s)                            # (N,s,s,Cin)
        g = jnp.einsum("nijc,ce->nije", pooled, params["w_br"][k])
        g = jnp.maximum(g * params["s_br"][k][0] + params["b_br"][k][0], 0.0)
        feats.append(_upsample_ref(g, H, W))
    cat = jnp.concatenate(feats, axis=-1)                            # (N,H,W,2Cin)
    z = jnp.einsum("nhwc,co->nhwo", cat, params["w_out"])
    z = jnp.maximum(z * params["s_out"][0] + params["b_out"][0], 0.0)
    return jnp.transpose(z, (0, 3, 1, 2))


# ------------------------------------ main --------------------------------------

if __name__ == "__main__":
    key = jax.random.PRNGKey(0)
    kx, kp = jax.random.split(key)
    # Fast-SCNN applies PyramidPooling(128, 128) on the 1/32-resolution feature map,
    # so use 128 channels (keeps lanes dense) at a small 16x16 spatial size.
    N, Cin, Cout, H, W = 2, 128, 128, 16, 16
    x = jax.random.normal(kx, (N, Cin, H, W), jnp.float32)
    params = init_params(kp, Cin, Cout)

    fwd = jax.jit(pyramid_pooling_forward)
    out = jax.block_until_ready(fwd(x, params))
    ref = reference(x, params)

    assert out.shape == (N, Cout, H, W), out.shape
    err = float(jnp.max(jnp.abs(out - ref)))
    # bf16 matmul operands (f32 accumulation) -> slightly loosened tolerance.
    assert bool(jnp.allclose(out, ref, atol=5e-2, rtol=5e-2)), \
        f"PyramidPooling mismatch (max abs err {err})"
    print("KERNEL_OK")
</pallas_src>

<mosaic_0001>
module attributes {stable_mosaic.version = 11 : i64} {
  func.func @_pool_kernel(%arg0: i32, %arg1: i32, %arg2: memref<50x128xbf16, #tpu.memory_space<vmem>>, %arg3: memref<1x128x128xbf16, #tpu.memory_space<vmem>>, %arg4: memref<1x50x128xf32, #tpu.memory_space<vmem>>) attributes {dimension_semantics = [#tpu.dimension_semantics<parallel>, #tpu.dimension_semantics<arbitrary>], iteration_bounds = array<i64: 2, 2>, scalar_prefetch = 0 : i64, scratch_operands = 0 : i64, tpu.core_type = #tpu.core_type<tc>, window_params = [{transform_indices = @transform_0, window_bounds = array<i64: 50, 128>}, {transform_indices = @transform_1, window_bounds = array<i64: 1, 128, 128>}, {transform_indices = @transform_2, window_bounds = array<i64: 1, 50, 128>}]} {
    %c0_i32 = arith.constant 0 : i32
    %0 = arith.cmpi eq, %arg1, %c0_i32 : i32
    %1 = arith.extui %0 : i1 to i32
    %c0_i32_0 = arith.constant 0 : i32
    %2 = arith.cmpi ne, %1, %c0_i32_0 : i32
    scf.if %2 {
      %cst_11 = arith.constant 0.000000e+00 : f32
      %13 = vector.broadcast %cst_11 : f32 to vector<1x50x128xf32>
      %c0_12 = arith.constant 0 : index
      %c0_13 = arith.constant 0 : index
      %c0_14 = arith.constant 0 : index
      %14 = vector.load %arg4[%c0_12, %c0_13, %c0_14] : memref<1x50x128xf32, #tpu.memory_space<vmem>>, vector<1x50x128xf32>
      tpu.vector_store %arg4[%c0_12, %c0_13, %c0_14], %13 {strides = array<i32>} : memref<1x50x128xf32, #tpu.memory_space<vmem>>, vector<1x50x128xf32>,
    } else {
    }
    %c0 = arith.constant 0 : index
    %c0_1 = arith.constant 0 : index
    %c0_2 = arith.constant 0 : index
    %3 = vector.load %arg4[%c0, %c0_1, %c0_2] : memref<1x50x128xf32, #tpu.memory_space<vmem>>, vector<1x50x128xf32>
    %4 = vector.shape_cast %3 : vector<1x50x128xf32> to vector<50x128xf32>
    %c0_3 = arith.constant 0 : index
    %c0_4 = arith.constant 0 : index
    %5 = vector.load %arg2[%c0_3, %c0_4] : memref<50x128xbf16, #tpu.memory_space<vmem>>, vector<50x128xbf16>
    %c0_5 = arith.constant 0 : index
    %c0_6 = arith.constant 0 : index
    %c0_7 = arith.constant 0 : index
    %6 = vector.load %arg3[%c0_5, %c0_6, %c0_7] : memref<1x128x128xbf16, #tpu.memory_space<vmem>>, vector<1x128x128xbf16>
    %7 = vector.shape_cast %6 : vector<1x128x128xbf16> to vector<128x128xbf16>
    %cst = arith.constant dense<0.000000e+00> : vector<50x128xf32>
    %8 = tpu.matmul %5, %7, %cst {dimension_numbers = #tpu.dot_dimension_numbers<[1], [0], [0], [1], [0, 0, 1, 1], [], []>} : vector<50x128xbf16>, vector<128x128xbf16>, vector<50x128xf32> -> vector<50x128xf32>
    %9 = arith.addf %4, %8 : vector<50x128xf32>
    %c0_8 = arith.constant 0 : index
    %c0_9 = arith.constant 0 : index
    %c0_10 = arith.constant 0 : index
    %10 = vector.load %arg4[%c0_8, %c0_9, %c0_10] : memref<1x50x128xf32, #tpu.memory_space<vmem>>, vector<1x50x128xf32>
    %11 = vector.shape_cast %10 : vector<1x50x128xf32> to vector<50x128xf32>
    %12 = vector.shape_cast %9 : vector<50x128xf32> to vector<1x50x128xf32>
    tpu.vector_store %arg4[%c0_8, %c0_9, %c0_10], %12 {strides = array<i32>} : memref<1x50x128xf32, #tpu.memory_space<vmem>>, vector<1x50x128xf32>,
    return
  }
  func.func @transform_0(%arg0: i32, %arg1: i32) -> (i32, i32) {
    %c0_i32 = arith.constant 0 : i32
    %c0_i32_0 = arith.constant 0 : i32
    return %c0_i32, %arg1 : i32, i32
  }
  func.func @transform_1(%arg0: i32, %arg1: i32) -> (i32, i32, i32) {
    %c0_i32 = arith.constant 0 : i32
    %c0_i32_0 = arith.constant 0 : i32
    return %arg0, %arg1, %c0_i32 : i32, i32, i32
  }
  func.func @transform_2(%arg0: i32, %arg1: i32) -> (i32, i32, i32) {
    %c0_i32 = arith.constant 0 : i32
    %c0_i32_0 = arith.constant 0 : i32
    %c0_i32_1 = arith.constant 0 : i32
    return %arg0, %c0_i32, %c0_i32_0 : i32, i32, i32
  }
}

module attributes {stable_mosaic.version = 11 : i64} {
  func.func @_ppm_out_kernel(%arg0: i32, %arg1: i32, %arg2: memref<1x128x128xbf16, #tpu.memory_space<vmem>>, %arg3: memref<128x128xbf16, #tpu.memory_space<vmem>>, %arg4: memref<8x12x128xf32, #tpu.memory_space<vmem>>, %arg5: memref<1x12x16x128xf32, #tpu.memory_space<vmem>>, %arg6: memref<1x128xf32, #tpu.memory_space<vmem>>, %arg7: memref<1x128xf32, #tpu.memory_space<vmem>>, %arg8: memref<1x8x16x128xf32, #tpu.memory_space<vmem>>) attributes {dimension_semantics = [#tpu.dimension_semantics<parallel>, #tpu.dimension_semantics<parallel>], iteration_bounds = array<i64: 2, 2>, scalar_prefetch = 0 : i64, scratch_operands = 0 : i64, tpu.core_type = #tpu.core_type<tc>, window_params = [{transform_indices = @transform_0, window_bounds = array<i64: 1, 128, 128>}, {pipeline_mode = #tpu.pipeline_mode<synchronous>, transform_indices = @transform_1, window_bounds = array<i64: 128, 128>}, {transform_indices = @transform_2, window_bounds = array<i64: 8, 12, 128>}, {transform_indices = @transform_3, window_bounds = array<i64: 1, 12, 16, 128>}, {pipeline_mode = #tpu.pipeline_mode<synchronous>, transform_indices = @transform_4, window_bounds = array<i64: 1, 128>}, {pipeline_mode = #tpu.pipeline_mode<synchronous>, transform_indices = @transform_5, window_bounds = array<i64: 1, 128>}, {transform_indices = @transform_6, window_bounds = array<i64: 1, 8, 16, 128>}]} {
    %c0 = arith.constant 0 : index
    %c0_0 = arith.constant 0 : index
    %c0_1 = arith.constant 0 : index
    %0 = vector.load %arg2[%c0, %c0_0, %c0_1] : memref<1x128x128xbf16, #tpu.memory_space<vmem>>, vector<1x128x128xbf16>
    %1 = vector.shape_cast %0 : vector<1x128x128xbf16> to vector<128x128xbf16>
    %c0_2 = arith.constant 0 : index
    %c0_3 = arith.constant 0 : index
    %2 = vector.load %arg3[%c0_2, %c0_3] : memref<128x128xbf16, #tpu.memory_space<vmem>>, vector<128x128xbf16>
    %cst = arith.constant dense<0.000000e+00> : vector<128x128xf32>
    %3 = tpu.matmul %1, %2, %cst {dimension_numbers = #tpu.dot_dimension_numbers<[1], [0], [0], [1], [0, 0, 1, 1], [], []>} : vector<128x128xbf16>, vector<128x128xbf16>, vector<128x128xf32> -> vector<128x128xf32>
    %4 = vector.shape_cast %3 : vector<128x128xf32> to vector<8x16x128xf32>
    %c0_4 = arith.constant 0 : index
    %c0_5 = arith.constant 0 : index
    %c0_6 = arith.constant 0 : index
    %5 = vector.load %arg4[%c0_4, %c0_5, %c0_6] : memref<8x12x128xf32, #tpu.memory_space<vmem>>, vector<8x12x128xf32>
    %c0_7 = arith.constant 0 : index
    %c0_8 = arith.constant 0 : index
    %c0_9 = arith.constant 0 : index
    %c0_10 = arith.constant 0 : index
    %6 = vector.load %arg5[%c0_7, %c0_8, %c0_9, %c0_10] : memref<1x12x16x128xf32, #tpu.memory_space<vmem>>, vector<1x12x16x128xf32>
    %7 = vector.shape_cast %6 : vector<1x12x16x128xf32> to vector<12x16x128xf32>
    %8 = vector.extract_strided_slice %5 {offsets = [0, 0, 0], sizes = [8, 1, 128], strides = [1, 1, 1]} : vector<8x12x128xf32> to vector<8x1x128xf32>
    %9 = vector.extract_strided_slice %7 {offsets = [0, 0, 0], sizes = [1, 16, 128], strides = [1, 1, 1]} : vector<12x16x128xf32> to vector<1x16x128xf32>
    %10 = vector.broadcast %8 : vector<8x1x128xf32> to vector<8x16x128xf32>
    %11 = vector.broadcast %9 : vector<1x16x128xf32> to vector<8x16x128xf32>
    %12 = arith.mulf %10, %11 : vector<8x16x128xf32>
    %13 = arith.addf %4, %12 : vector<8x16x128xf32>
    %14 = vector.extract_strided_slice %5 {offsets = [0, 1, 0], sizes = [8, 1, 128], strides = [1, 1, 1]} : vector<8x12x128xf32> to vector<8x1x128xf32>
    %15 = vector.extract_strided_slice %7 {offsets = [1, 0, 0], sizes = [1, 16, 128], strides = [1, 1, 1]} : vector<12x16x128xf32> to vector<1x16x128xf32>
    %16 = vector.broadcast %14 : vector<8x1x128xf32> to vector<8x16x128xf32>
    %17 = vector.broadcast %15 : vector<1x16x128xf32> to vector<8x16x128xf32>
    %18 = arith.mulf %16, %17 : vector<8x16x128xf32>
    %19 = arith.addf %13, %18 : vector<8x16x128xf32>
    %20 = vector.extract_strided_slice %5 {offsets = [0, 2, 0], sizes = [8, 1, 128], strides = [1, 1, 1]} : vector<8x12x128xf32> to vector<8x1x128xf32>
    %21 = vector.extract_strided_slice %7 {offsets = [2, 0, 0], sizes = [1, 16, 128], strides = [1, 1, 1]} : vector<12x16x128xf32> to vector<1x16x128xf32>
    %22 = vector.broadcast %20 : vector<8x1x128xf32> to vector<8x16x128xf32>
    %23 = vector.broadcast %21 : vector<1x16x128xf32> to vector<8x16x128xf32>
    %24 = arith.mulf %22, %23 : vector<8x16x128xf32>
    %25 = arith.addf %19, %24 : vector<8x16x128xf32>
    %26 = vector.extract_strided_slice %5 {offsets = [0, 3, 0], sizes = [8, 1, 128], strides = [1, 1, 1]} : vector<8x12x128xf32> to vector<8x1x128xf32>
    %27 = vector.extract_strided_slice %7 {offsets = [3, 0, 0], sizes = [1, 16, 128], strides = [1, 1, 1]} : vector<12x16x128xf32> to vector<1x16x128xf32>
    %28 = vector.broadcast %26 : vector<8x1x128xf32> to vector<8x16x128xf32>
    %29 = vector.broadcast %27 : vector<1x16x128xf32> to vector<8x16x128xf32>
    %30 = arith.mulf %28, %29 : vector<8x16x128xf32>
    %31 = arith.addf %25, %30 : vector<8x16x128xf32>
    %32 = vector.extract_strided_slice %5 {offsets = [0, 4, 0], sizes = [8, 1, 128], strides = [1, 1, 1]} : vector<8x12x128xf32> to vector<8x1x128xf32>
    %33 = vector.extract_strided_slice %7 {offsets = [4, 0, 0], sizes = [1, 16, 128], strides = [1, 1, 1]} : vector<12x16x128xf32> to vector<1x16x128xf32>
    %34 = vector.broadcast %32 : vector<8x1x128xf32> to vector<8x16x128xf32>
    %35 = vector.broadcast %33 : vector<1x16x128xf32> to vector<8x16x128xf32>
    %36 = arith.mulf %34, %35 : vector<8x16x128xf32>
    %37 = arith.addf %31, %36 : vector<8x16x128xf32>
    %38 = vector.extract_strided_slice %5 {offsets = [0, 5, 0], sizes = [8, 1, 128], strides = [1, 1, 1]} : vector<8x12x128xf32> to vector<8x1x128xf32>
    %39 = vector.extract_strided_slice %7 {offsets = [5, 0, 0], sizes = [1, 16, 128], strides = [1, 1, 1]} : vector<12x16x128xf32> to vector<1x16x128xf32>
    %40 = vector.broadcast %38 : vector<8x1x128xf32> to vector<8x16x128xf32>
    %41 = vector.broadcast %39 : vector<1x16x128xf32> to vector<8x16x128xf32>
    %42 = arith.mulf %40, %41 : vector<8x16x128xf32>
    %43 = arith.addf %37, %42 : vector<8x16x128xf32>
    %44 = vector.extract_strided_slice %5 {offsets = [0, 6, 0], sizes = [8, 1, 128], strides = [1, 1, 1]} : vector<8x12x128xf32> to vector<8x1x128xf32>
    %45 = vector.extract_strided_slice %7 {offsets = [6, 0, 0], sizes = [1, 16, 128], strides = [1, 1, 1]} : vector<12x16x128xf32> to vector<1x16x128xf32>
    %46 = vector.broadcast %44 : vector<8x1x128xf32> to vector<8x16x128xf32>
    %47 = vector.broadcast %45 : vector<1x16x128xf32> to vector<8x16x128xf32>
    %48 = arith.mulf %46, %47 : vector<8x16x128xf32>
    %49 = arith.addf %43, %48 : vector<8x16x128xf32>
    %50 = vector.extract_strided_slice %5 {offsets = [0, 7, 0], sizes = [8, 1, 128], strides = [1, 1, 1]} : vector<8x12x128xf32> to vector<8x1x128xf32>
    %51 = vector.extract_strided_slice %7 {offsets = [7, 0, 0], sizes = [1, 16, 128], strides = [1, 1, 1]} : vector<12x16x128xf32> to vector<1x16x128xf32>
    %52 = vector.broadcast %50 : vector<8x1x128xf32> to vector<8x16x128xf32>
    %53 = vector.broadcast %51 : vector<1x16x128xf32> to vector<8x16x128xf32>
    %54 = arith.mulf %52, %53 : vector<8x16x128xf32>
    %55 = arith.addf %49, %54 : vector<8x16x128xf32>
    %56 = vector.extract_strided_slice %5 {offsets = [0, 8, 0], sizes = [8, 1, 128], strides = [1, 1, 1]} : vector<8x12x128xf32> to vector<8x1x128xf32>
    %57 = vector.extract_strided_slice %7 {offsets = [8, 0, 0], sizes = [1, 16, 128], strides = [1, 1, 1]} : vector<12x16x128xf32> to vector<1x16x128xf32>
    %58 = vector.broadcast %56 : vector<8x1x128xf32> to vector<8x16x128xf32>
    %59 = vector.broadcast %57 : vector<1x16x128xf32> to vector<8x16x128xf32>
    %60 = arith.mulf %58, %59 : vector<8x16x128xf32>
    %61 = arith.addf %55, %60 : vector<8x16x128xf32>
    %62 = vector.extract_strided_slice %5 {offsets = [0, 9, 0], sizes = [8, 1, 128], strides = [1, 1, 1]} : vector<8x12x128xf32> to vector<8x1x128xf32>
    %63 = vector.extract_strided_slice %7 {offsets = [9, 0, 0], sizes = [1, 16, 128], strides = [1, 1, 1]} : vector<12x16x128xf32> to vector<1x16x128xf32>
    %64 = vector.broadcast %62 : vector<8x1x128xf32> to vector<8x16x128xf32>
    %65 = vector.broadcast %63 : vector<1x16x128xf32> to vector<8x16x128xf32>
    %66 = arith.mulf %64, %65 : vector<8x16x128xf32>
    %67 = arith.addf %61, %66 : vector<8x16x128xf32>
    %68 = vector.extract_strided_slice %5 {offsets = [0, 10, 0], sizes = [8, 1, 128], strides = [1, 1, 1]} : vector<8x12x128xf32> to vector<8x1x128xf32>
    %69 = vector.extract_strided_slice %7 {offsets = [10, 0, 0], sizes = [1, 16, 128], strides = [1, 1, 1]} : vector<12x16x128xf32> to vector<1x16x128xf32>
    %70 = vector.broadcast %68 : vector<8x1x128xf32> to vector<8x16x128xf32>
    %71 = vector.broadcast %69 : vector<1x16x128xf32> to vector<8x16x128xf32>
    %72 = arith.mulf %70, %71 : vector<8x16x128xf32>
    %73 = arith.addf %67, %72 : vector<8x16x128xf32>
    %74 = vector.extract_strided_slice %5 {offsets = [0, 11, 0], sizes = [8, 1, 128], strides = [1, 1, 1]} : vector<8x12x128xf32> to vector<8x1x128xf32>
    %75 = vector.extract_strided_slice %7 {offsets = [11, 0, 0], sizes = [1, 16, 128], strides = [1, 1, 1]} : vector<12x16x128xf32> to vector<1x16x128xf32>
    %76 = vector.broadcast %74 : vector<8x1x128xf32> to vector<8x16x128xf32>
    %77 = vector.broadcast %75 : vector<1x16x128xf32> to vector<8x16x128xf32>
    %78 = arith.mulf %76, %77 : vector<8x16x128xf32>
    %79 = arith.addf %73, %78 : vector<8x16x128xf32>
    %c0_11 = arith.constant 0 : index
    %c0_12 = arith.constant 0 : index
    %80 = vector.load %arg6[%c0_11, %c0_12] : memref<1x128xf32, #tpu.memory_space<vmem>>, vector<1x128xf32>
    %81 = vector.shape_cast %80 : vector<1x128xf32> to vector<1x1x128xf32>
    %82 = vector.broadcast %81 : vector<1x1x128xf32> to vector<8x16x128xf32>
    %83 = arith.mulf %79, %82 : vector<8x16x128xf32>
    %c0_13 = arith.constant 0 : index
    %c0_14 = arith.constant 0 : index
    %84 = vector.load %arg7[%c0_13, %c0_14] : memref<1x128xf32, #tpu.memory_space<vmem>>, vector<1x128xf32>
    %85 = vector.shape_cast %84 : vector<1x128xf32> to vector<1x1x128xf32>
    %86 = vector.broadcast %85 : vector<1x1x128xf32> to vector<8x16x128xf32>
    %87 = arith.addf %83, %86 : vector<8x16x128xf32>
    %cst_15 = arith.constant 0.000000e+00 : f32
    %88 = vector.broadcast %cst_15 : f32 to vector<8x16x128xf32>
    %89 = arith.maximumf %87, %88 : vector<8x16x128xf32>
    %c0_16 = arith.constant 0 : index
    %c0_17 = arith.constant 0 : index
    %c0_18 = arith.constant 0 : index
    %c0_19 = arith.constant 0 : index
    %90 = vector.load %arg8[%c0_16, %c0_17, %c0_18, %c0_19] : memref<1x8x16x128xf32, #tpu.memory_space<vmem>>, vector<1x8x16x128xf32>
    %91 = vector.shape_cast %90 : vector<1x8x16x128xf32> to vector<8x16x128xf32>
    %92 = vector.shape_cast %89 : vector<8x16x128xf32> to vector<1x8x16x128xf32>
    tpu.vector_store %arg8[%c0_16, %c0_17, %c0_18, %c0_19], %92 {strides = array<i32>} : memref<1x8x16x128xf32, #tpu.memory_space<vmem>>, vector<1x8x16x128xf32>,
    return
  }
  func.func @transform_0(%arg0: i32, %arg1: i32) -> (i32, i32, i32) {
    %c0_i32 = arith.constant 0 : i32
    %c0_i32_0 = arith.constant 0 : i32
    return %arg0, %arg1, %c0_i32 : i32, i32, i32
  }
  func.func @transform_1(%arg0: i32, %arg1: i32) -> (i32, i32) {
    %c0_i32 = arith.constant 0 : i32
    %c0_i32_0 = arith.constant 0 : i32
    %c0_i32_1 = arith.constant 0 : i32
    return %c0_i32, %c0_i32_0 : i32, i32
  }
  func.func @transform_2(%arg0: i32, %arg1: i32) -> (i32, i32, i32) {
    %c0_i32 = arith.constant 0 : i32
    %c0_i32_0 = arith.constant 0 : i32
    %c0_i32_1 = arith.constant 0 : i32
    return %arg1, %c0_i32, %c0_i32_0 : i32, i32, i32
  }
  func.func @transform_3(%arg0: i32, %arg1: i32) -> (i32, i32, i32, i32) {
    %c0_i32 = arith.constant 0 : i32
    %c0_i32_0 = arith.constant 0 : i32
    %c0_i32_1 = arith.constant 0 : i32
    %c0_i32_2 = arith.constant 0 : i32
    return %arg0, %c0_i32, %c0_i32_0, %c0_i32_1 : i32, i32, i32, i32
  }
  func.func @transform_4(%arg0: i32, %arg1: i32) -> (i32, i32) {
    %c0_i32 = arith.constant 0 : i32
    %c0_i32_0 = arith.constant 0 : i32
    %c0_i32_1 = arith.constant 0 : i32
    return %c0_i32, %c0_i32_0 : i32, i32
  }
  func.func @transform_5(%arg0: i32, %arg1: i32) -> (i32, i32) {
    %c0_i32 = arith.constant 0 : i32
    %c0_i32_0 = arith.constant 0 : i32
    %c0_i32_1 = arith.constant 0 : i32
    return %c0_i32, %c0_i32_0 : i32, i32
  }
  func.func @transform_6(%arg0: i32, %arg1: i32) -> (i32, i32, i32, i32) {
    %c0_i32 = arith.constant 0 : i32
    %c0_i32_0 = arith.constant 0 : i32
    %c0_i32_1 = arith.constant 0 : i32
    return %arg0, %arg1, %c0_i32, %c0_i32_0 : i32, i32, i32, i32
  }
}

</mosaic_0001>

<llo_original>
// kernel: pyramid_pooling_forward.2
$region0: #{pyramid_pooling_forward.2}
  #allocation0 [shape = 'u32[]', space=smem, size = 0x4, offset = 0x4, fixed_abs, tag = 'smem constant byte address 0x4 - core index']
  #allocation1 [shape = 'u32[72,128]{1,0:T(1,128)}', space=vmem, size = 0x9000, scoped, tag = 'internal scratch']
  %s0 = inlined_call_operand.vmem [shape: bf16[50,256], index: 0, kind: input, shape index: {}]
  %s1 = inlined_call_operand.vmem [shape: bf16[2,256,128], index: 1, kind: input, shape index: {}]
  %s2 = inlined_call_operand.vmem [shape: f32[2,50,128], index: 2, kind: output, shape index: {}]
  %s3 = sld [smem:[#allocation0]]
  $region86: #{pyramid_pooling_forward.2} parent=0
    _
  %s5 = ssub.s32 1, %s3
  %s6 = scalar_select 0, %s5, %s3
  $region1: #{pyramid_pooling_forward.2} parent=0
    #allocation2 [shape = 'u8[28672]{0}', space=vmem, size = 0x7000, scoped, tag = 'input window, operand 0']
    loop: start=0, step=1, limit=6
    $region2: #{pyramid_pooling_forward.2} parent=1 // loop_pre_header
      _
    $region3: #{pyramid_pooling_forward.2} parent=1 // loop_header
      %s8 = sphi 0, %s12
      %p9 = scmp.ge.s32.totalorder %s8, 6
      %s15 = sphi 0, %s27
      %s16 = sphi 0, %s23
      %s17 = sphi 0, %s15
      %s18 = sphi 0, %s16
      %s19 = sphi 0, %s17
      %s20 = sphi 0, %s18
      %s30 = sphi 0, %s32
      %s33 = sphi 0, %s30
      %s34 = sphi 0, %s33
      %s50 = sphi 0, %s34
      %s58 = sphi 0, %s60
      %s61 = sphi 0, %s58
      %s62 = sphi 0, %s61
      %s78 = sphi 0, %s62
      %s84 = sphi 0, %s86
      %s87 = sphi 0, %s84
      %s88 = sphi 0, %s87
      %s104 = sphi 0, %s88
    $region4: #{pyramid_pooling_forward.2} parent=1 // loop_header_branch
      %11 = sbr.rel (%p9) target = $region8
    $region5: #{pyramid_pooling_forward.2} parent=1 // loop_body
      %s13 = ssub.s32 %s8, 1
      %s14 = ssub.s32 %s8, 2
      %s21 = sadd.s32 1, %s16
      %p22 = scmp.ge.s32.totalorder %s21, 2
      %s23 = scalar_select %p22, 0, %s21
      %s24 = sadd.s32 1, %s15
      %s25 = scalar_select %p22, %s24, %s15
      %p26 = scmp.ge.s32.totalorder %s25, 2
      %s27 = scalar_select %p26, 0, %s25
      %s28 = ssub.s32 %s16, %s23
      %p29 = scmp.eq.s32.totalorder %s28, 0
      %s31 = sadd.s32 %s30, 1
      %s32 = scalar_select %p29, %s30, %s31
      %p35 = pneg %p29
      %p36 = scmp.eq.s32.totalorder %s8, 3
      %p37 = por %p35, %p36
      %p38 = scmp.ne.s32.totalorder %s30, %s33
      %p39 = scmp.eq.s32.totalorder %s8, 0
      %p40 = por %p38, %p39
      %p41 = scmp.ne.s32.totalorder %s30, %s33
      %p42 = scmp.eq.s32.totalorder %s13, 3
      %p43 = por %p41, %p42
      %p44 = scmp.ne.s32.totalorder %s33, %s34
      %p45 = scmp.eq.s32.totalorder %s13, 0
      %p46 = por %p44, %p45
      %p47 = scmp.ne.s32.totalorder %s33, %s34
      %p48 = scmp.eq.s32.totalorder %s14, 3
      %p49 = por %p47, %p48
      %p51 = scmp.ne.s32.totalorder %s34, %s50
      %p52 = scmp.eq.s32.totalorder %s14, 0
      %p53 = por %p51, %p52
      %s54 = ssub.s32 %s15, %s27
      %s55 = ssub.s32 %s16, %s23
      %s56 = sor.u32 %s54, %s55
      %p57 = scmp.eq.s32.totalorder %s56, 0
      %s59 = sadd.s32 %s58, 1
      %s60 = scalar_select %p57, %s58, %s59
      %p63 = pneg %p57
      %p64 = scmp.eq.s32.totalorder %s8, 3
      %p65 = por %p63, %p64
      %p66 = scmp.ne.s32.totalorder %s58, %s61
      %p67 = scmp.eq.s32.totalorder %s8, 0
      %p68 = por %p66, %p67
      %p69 = scmp.ne.s32.totalorder %s58, %s61
      %p70 = scmp.eq.s32.totalorder %s13, 3
      %p71 = por %p69, %p70
      %p72 = scmp.ne.s32.totalorder %s61, %s62
      %p73 = scmp.eq.s32.totalorder %s13, 0
      %p74 = por %p72, %p73
      %p75 = scmp.ne.s32.totalorder %s61, %s62
      %p76 = scmp.eq.s32.totalorder %s14, 3
      %p77 = por %p75, %p76
      %p79 = scmp.ne.s32.totalorder %s62, %s78
      %p80 = scmp.eq.s32.totalorder %s14, 0
      %p81 = por %p79, %p80
      %s82 = ssub.s32 %s15, %s27
      %p83 = scmp.eq.s32.totalorder %s82, 0
      %s85 = sadd.s32 %s84, 1
      %s86 = scalar_select %p83, %s84, %s85
      %p89 = pneg %p83
      %p90 = scmp.eq.s32.totalorder %s8, 3
      %p91 = por %p89, %p90
      %p92 = scmp.ne.s32.totalorder %s84, %s87
      %p93 = scmp.eq.s32.totalorder %s8, 0
      %p94 = por %p92, %p93
      %p95 = scmp.ne.s32.totalorder %s84, %s87
      %p96 = scmp.eq.s32.totalorder %s13, 3
      %p97 = por %p95, %p96
      %p98 = scmp.ne.s32.totalorder %s87, %s88
      %p99 = scmp.eq.s32.totalorder %s13, 0
      %p100 = por %p98, %p99
      %p101 = scmp.ne.s32.totalorder %s87, %s88
      %p102 = scmp.eq.s32.totalorder %s14, 3
      %p103 = por %p101, %p102
      %p105 = scmp.ne.s32.totalorder %s88, %s104
      %p106 = scmp.eq.s32.totalorder %s14, 0
      %p107 = por %p105, %p106
      %p108 = scmp.le.s32.totalorder 1, %s8
      %p109 = scmp.lt.s32.totalorder %s8, 5
      %p110 = pnand %p108, %p109
      %p111 = pneg %p110
      // Predicated region
      $region9: #{pyramid_pooling_forward.2} parent=5 // pred_check
        _
      $region10: #{pyramid_pooling_forward.2} parent=5 // pred_check_branch
        %113 = sbr.rel (%p110) target = $region12
      $region11: #{pyramid_pooling_forward.2} parent=5 // pred_region
        %s114 = ssub.s32 %s8, 1
      $region12: #{pyramid_pooling_forward.2} parent=5 // pred_fallthru
        _
      %p115 = scmp.lt.s32.totalorder %s8, 4
      // Predicated region
      $region13: #{pyramid_pooling_forward.2} parent=5 // pred_check
        %p116 = pneg %p115
      $region14: #{pyramid_pooling_forward.2} parent=5 // pred_check_branch
        %118 = sbr.rel (%p116) target = $region16
      $region15: #{pyramid_pooling_forward.2} parent=5 // pred_region
        // Predicated region
        $region17: #{pyramid_pooling_forward.2} parent=15 // pred_check
          %p119 = pneg %p40
        $region18: #{pyramid_pooling_forward.2} parent=15 // pred_check_branch
          %121 = sbr.rel (%p119) target = $region20
        $region19: #{pyramid_pooling_forward.2} parent=15 // pred_region
          %s122 = sand.u32 %s30, 1
          %s123 = sand.u32 %s30, 1
          %s124 = smul.addr %s123, 28
          %s125 = scalar_lea.vmem [#allocation2], %s124
          %s126 = smul.addr %s16, 4
          %s127 = scalar_lea.vmem %s0, %s126
          // Predicated region
          $region21: #{pyramid_pooling_forward.2} parent=19 // pred_check
            _
          $region22: #{pyramid_pooling_forward.2} parent=19 // pred_check_branch
            %129 = sbr.rel (0) target = $region24
          $region23: #{pyramid_pooling_forward.2} parent=19 // pred_region
            // Predicated region
            $region25: #{pyramid_pooling_forward.2} parent=23 // pred_check
              _
            $region26: #{pyramid_pooling_forward.2} parent=23 // pred_check_branch
              %131 = sbr.rel target = $region28
            $region27: #{pyramid_pooling_forward.2} parent=23 // pred_region
              // Predicated region
              $region40: #{pyramid_pooling_forward.2} parent=27 // pred_check
                _
              $region41: #{pyramid_pooling_forward.2} parent=27 // pred_check_branch
                %159 = sbr.rel (0) target = $region43
              $region42: #{pyramid_pooling_forward.2} parent=27 // pred_region
                loop: start=0, step=1, limit=1
                $region44: #{pyramid_pooling_forward.2} parent=42 // loop_pre_header
                  _
                $region45: #{pyramid_pooling_forward.2} parent=42 // loop_header
                  %s161 = sphi 0, %s165
                  %p162 = scmp.ge.s32.totalorder %s161, 1
                  %s166 = sphi %s127, %s127
                  %s167 = sphi %s125, %s125
                $region46: #{pyramid_pooling_forward.2} parent=42 // loop_header_branch
                  %164 = sbr.rel (%p162) target = $region50
                $region47: #{pyramid_pooling_forward.2} parent=42 // loop_body
                  _
                $region48: #{pyramid_pooling_forward.2} parent=42 // loop_footer
                  %s165 = sadd.s32 1, %s161
                $region49: #{pyramid_pooling_forward.2} parent=42 // loop_footer_branch
                  %160 = sbr.rel target = $region45
                $region50: #{pyramid_pooling_forward.2} parent=42 // loop_exit
                  _
                %s169 = ssub.s32 16, 1
                loop: start=0, step=1, limit=1
                $region51: #{pyramid_pooling_forward.2} parent=42 // loop_pre_header
                  _
                $region52: #{pyramid_pooling_forward.2} parent=42 // loop_header
                  %s171 = sphi 0, %s175
                  %p172 = scmp.ge.s32.totalorder %s171, 1
                  %s176 = sphi %s127, %s127
                  %s177 = sphi %s125, %s125
                $region53: #{pyramid_pooling_forward.2} parent=42 // loop_header_branch
                  %174 = sbr.rel (%p172) target = $region57
                $region54: #{pyramid_pooling_forward.2} parent=42 // loop_body
                  %v178 = vld [vmem:[%s176] sm:%s169]
                  %179 = vst [vmem:[%s177] sm:%s169] %v178
                  %v180 = vld [vmem:[%s176 + $0x8] sm:%s169]
                  %181 = vst [vmem:[%s177 + $0x4] sm:%s169] %v180
                  %v182 = vld [vmem:[%s176 + $0x10] sm:%s169]
                  %183 = vst [vmem:[%s177 + $0x8] sm:%s169] %v182
                  %v184 = vld [vmem:[%s176 + $0x18] sm:%s169]
                  %185 = vst [vmem:[%s177 + $0xc] sm:%s169] %v184
                  %v186 = vld [vmem:[%s176 + $0x20] sm:%s169]
                  %187 = vst [vmem:[%s177 + $0x10] sm:%s169] %v186
                  %v188 = vld [vmem:[%s176 + $0x28] sm:%s169]
                  %189 = vst [vmem:[%s177 + $0x14] sm:%s169] %v188
                  %v190 = vld [vmem:[%s176 + $0x30] sm:%s169]
                  %191 = vst [vmem:[%s177 + $0x18] sm:%s169] %v190
                $region55: #{pyramid_pooling_forward.2} parent=42 // loop_footer
                  %s175 = sadd.s32 1, %s171
                $region56: #{pyramid_pooling_forward.2} parent=42 // loop_footer_branch
                  %170 = sbr.rel target = $region52
                $region57: #{pyramid_pooling_forward.2} parent=42 // loop_exit
                  _
              $region43: #{pyramid_pooling_forward.2} parent=27 // pred_fallthru
                _
            $region28: #{pyramid_pooling_forward.2} parent=23 // pred_fallthru
              _
            // Predicated region
            $region29: #{pyramid_pooling_forward.2} parent=23 // pred_check
              _
            $region30: #{pyramid_pooling_forward.2} parent=23 // pred_check_branch
              %133 = sbr.rel (0) target = $region32
            $region31: #{pyramid_pooling_forward.2} parent=23 // pred_region
              %s135 = ssub.s32 16, 1
              loop: start=0, step=1, limit=1
              $region33: #{pyramid_pooling_forward.2} parent=31 // loop_pre_header
                _
              $region34: #{pyramid_pooling_forward.2} parent=31 // loop_header
                %s137 = sphi 0, %s141
                %p138 = scmp.ge.s32.totalorder %s137, 1
                %s142 = sphi %s127, %s127
                %s143 = sphi %s125, %s125
              $region35: #{pyramid_pooling_forward.2} parent=31 // loop_header_branch
                %140 = sbr.rel (%p138) target = $region39
              $region36: #{pyramid_pooling_forward.2} parent=31 // loop_body
                %v144 = vld [vmem:[%s142] sm:%s135]
                %145 = vst [vmem:[%s143] sm:%s135] %v144
                %v146 = vld [vmem:[%s142 + $0x8] sm:%s135]
                %147 = vst [vmem:[%s143 + $0x4] sm:%s135] %v146
                %v148 = vld [vmem:[%s142 + $0x10] sm:%s135]
                %149 = vst [vmem:[%s143 + $0x8] sm:%s135] %v148
                %v150 = vld [vmem:[%s142 + $0x18] sm:%s135]
                %151 = vst [vmem:[%s143 + $0xc] sm:%s135] %v150
                %v152 = vld [vmem:[%s142 + $0x20] sm:%s135]
                %153 = vst [vmem:[%s143 + $0x10] sm:%s135] %v152
                %v154 = vld [vmem:[%s142 + $0x28] sm:%s135]
                %155 = vst [vmem:[%s143 + $0x14] sm:%s135] %v154
                %v156 = vld [vmem:[%s142 + $0x30] sm:%s135]
                %157 = vst [vmem:[%s143 + $0x18] sm:%s135] %v156
              $region37: #{pyramid_pooling_forward.2} parent=31 // loop_footer
                %s141 = sadd.s32 1, %s137
              $region38: #{pyramid_pooling_forward.2} parent=31 // loop_footer_branch
                %136 = sbr.rel target = $region34
              $region39: #{pyramid_pooling_forward.2} parent=31 // loop_exit
                _
            $region32: #{pyramid_pooling_forward.2} parent=23 // pred_fallthru
              _
          $region24: #{pyramid_pooling_forward.2} parent=19 // pred_fallthru
            _
          %192 = vnop
        $region20: #{pyramid_pooling_forward.2} parent=15 // pred_fallthru
          _
        // Predicated region
        $region58: #{pyramid_pooling_forward.2} parent=15 // pred_check
          %p193 = pneg %p68
        $region59: #{pyramid_pooling_forward.2} parent=15 // pred_check_branch
          %195 = sbr.rel (%p193) target = $region61
        $region60: #{pyramid_pooling_forward.2} parent=15 // pred_region
          %s196 = smul.u32 16, %s16
          %p197 = scmp.lt.s32.totalorder %s15, 1
          %s198 = scalar_select %p197, %s15, 1
          %p199 = scmp.lt.s32.totalorder %s196, 31
          %s200 = scalar_select %p199, %s196, 31
          %s201 = smul.addr %s198, 32
          %s202 = sadd.s32 %s200, %s201
          %s203 = smul.addr %s202, 4
          %s204 = scalar_lea.vmem %s1, %s203
          %s205 = smul.u32 16, %s16
        $region61: #{pyramid_pooling_forward.2} parent=15 // pred_fallthru
          _
      $region16: #{pyramid_pooling_forward.2} parent=5 // pred_fallthru
        _
      %p206 = scmp.le.s32.totalorder 1, %s8
      %p207 = scmp.lt.s32.totalorder %s8, 5
      %p208 = pnand %p206, %p207
      %p209 = pneg %p208
      // Predicated region
      $region62: #{pyramid_pooling_forward.2} parent=5 // pred_check
        _
      $region63: #{pyramid_pooling_forward.2} parent=5 // pred_check_branch
        %211 = sbr.rel (%p208) target = $region65
      $region64: #{pyramid_pooling_forward.2} parent=5 // pred_region
        %s212 = ssub.s32 %s8, 1
        %s213 = sand.u32 %s33, 1
        %s214 = sand.u32 %s33, 1
        %s215 = smul.addr %s214, 28
        %s216 = scalar_lea.vmem [#allocation2], %s215
        // Predicated region
        $region66: #{pyramid_pooling_forward.2} parent=64 // pred_check
          %p217 = pneg %p46
        $region67: #{pyramid_pooling_forward.2} parent=64 // pred_check_branch
          %219 = sbr.rel (%p217) target = $region69
        $region68: #{pyramid_pooling_forward.2} parent=64 // pred_region
          _
        $region69: #{pyramid_pooling_forward.2} parent=64 // pred_fallthru
          _
        %s220 = sand.u32 %s33, 1
        %s221 = sand.u32 %s33, 1
        %s222 = smul.addr %s221, 28
        %s223 = scalar_lea.vmem [#allocation2], %s222
        %p224 = pneg %p46
        %p225 = pneg %p43
        %s226 = smul.u32 16, %s18
        %p227 = scmp.lt.s32.totalorder %s17, 1
        %s228 = scalar_select %p227, %s17, 1
        %p229 = scmp.lt.s32.totalorder %s226, 31
        %s230 = scalar_select %p229, %s226, 31
        %s231 = smul.addr %s228, 32
        %s232 = sadd.s32 %s230, %s231
        %s233 = smul.addr %s232, 4
        %s234 = scalar_lea.vmem %s1, %s233
        %p235 = pneg %p74
        %p236 = pneg %p71
        %p237 = pneg %p100
        %p238 = pneg %p97
        %p239 = scmp.lt.s32.totalorder %s17, 1
        %s240 = scalar_select %p239, %s17, 1
        %s241 = smul.addr %s240, 7
        %s242 = smul.addr %s241, 8
        %s243 = scalar_lea.vmem %s2, %s242
        %s244 = smul.u32 16, %s18
        %p245 = scmp.lt.s32.totalorder %s17, 1
        %s246 = scalar_select %p245, %s17, 1
        %p247 = scmp.lt.s32.totalorder %s244, 31
        %s248 = scalar_select %p247, %s244, 31
        %s249 = smul.addr %s246, 32
        %s250 = sadd.s32 %s248, %s249
        %s251 = smul.addr %s250, 4
        %s252 = scalar_lea.vmem %s1, %s251
        %s253 = smul.u32 16, %s18
        %p254 = scmp.lt.s32.totalorder %s17, 1
        %s255 = scalar_select %p254, %s17, 1
        %s256 = smul.addr %s255, 7
        %s257 = smul.addr %s256, 8
        %s258 = scalar_lea.vmem %s2, %s257
        %p259 = scmp.eq.s32.totalorder %s18, 0
        // Predicated region
        $region70: #{pyramid_pooling_forward.2} parent=64 // pred_check
          %p260 = pneg %p259
        $region71: #{pyramid_pooling_forward.2} parent=64 // pred_check_branch
          %262 = sbr.rel (%p260) target = $region73
        $region72: #{pyramid_pooling_forward.2} parent=64 // pred_region
          %263 = vst [vmem:[%s258] sm:$0xff] 0.0
          %264 = vst [vmem:[%s258 + $0x8] sm:$0xff] 0.0
          %265 = vst [vmem:[%s258 + $0x10] sm:$0xff] 0.0
          %266 = vst [vmem:[%s258 + $0x18] sm:$0xff] 0.0
          %267 = vst [vmem:[%s258 + $0x20] sm:$0xff] 0.0
          %268 = vst [vmem:[%s258 + $0x28] sm:$0xff] 0.0
          %269 = vst [vmem:[%s258 + $0x30] sm:$0x3] 0.0
        $region73: #{pyramid_pooling_forward.2} parent=64 // pred_fallthru
          _
        %v270 = vld [vmem:[%s258] sm:$0xff]
        %v271 = vld [vmem:[%s258 + $0x8] sm:$0xff]
        %v272 = vld [vmem:[%s258 + $0x10] sm:$0xff]
        %v273 = vld [vmem:[%s258 + $0x18] sm:$0xff]
        %v274 = vld [vmem:[%s258 + $0x20] sm:$0xff]
        %v275 = vld [vmem:[%s258 + $0x28] sm:$0xff]
        %v276 = vld [vmem:[%s258 + $0x30] sm:$0x3]
        %v277 = vld [vmem:[%s216] sm:$0xf]
        %v278 = vld [vmem:[%s216 + $0x4] sm:$0xf]
        %v279 = vld [vmem:[%s216 + $0x8] sm:$0xf]
        %v280 = vld [vmem:[%s216 + $0xc] sm:$0xf]
        %v281 = vld [vmem:[%s216 + $0x10] sm:$0xf]
        %v282 = vld [vmem:[%s216 + $0x14] sm:$0xf]
        %v283 = vld [vmem:[%s216 + $0x18] sm:$0x1]
        %v284 = vld [vmem:[%s252] sm:$0xf]
        %v285 = vld [vmem:[%s252 + $0x4] sm:$0xf]
        %v286 = vld [vmem:[%s252 + $0x8] sm:$0xf]
        %v287 = vld [vmem:[%s252 + $0xc] sm:$0xf]
        %v288 = vld [vmem:[%s252 + $0x10] sm:$0xf]
        %v289 = vld [vmem:[%s252 + $0x14] sm:$0xf]
        %v290 = vld [vmem:[%s252 + $0x18] sm:$0xf]
        %v291 = vld [vmem:[%s252 + $0x1c] sm:$0xf]
        %v292 = vld [vmem:[%s252 + $0x20] sm:$0xf]
        %v293 = vld [vmem:[%s252 + $0x24] sm:$0xf]
        %v294 = vld [vmem:[%s252 + $0x28] sm:$0xf]
        %v295 = vld [vmem:[%s252 + $0x2c] sm:$0xf]
        %v296 = vld [vmem:[%s252 + $0x30] sm:$0xf]
        %v297 = vld [vmem:[%s252 + $0x34] sm:$0xf]
        %v298 = vld [vmem:[%s252 + $0x38] sm:$0xf]
        %v299 = vld [vmem:[%s252 + $0x3c] sm:$0xf]
        %v307 = vunpack.c.l.b16 %v277
        %v308 = vunpack.c.l.b16 %v278
        %v309 = vunpack.c.l.b16 %v279
        %v310 = vunpack.c.l.b16 %v280
        %v311 = vunpack.c.l.b16 %v281
        %v312 = vunpack.c.l.b16 %v282
        %v313 = vunpack.c.l.b16 %v283
        %v314 = vpack.c.b16 %v308, %v307
        %v315 = vpack.c.b16 %v310, %v309
        %v316 = vpack.c.b16 %v312, %v311
        %v317 = vpack.c.b16 %v313, %v313
        %v338 = vunpack.c.l.b16 %v284
        %v339 = vunpack.c.l.b16 %v285
        %v340 = vunpack.c.l.b16 %v286
        %v341 = vunpack.c.l.b16 %v287
        %v342 = vunpack.c.l.b16 %v288
        %v343 = vunpack.c.l.b16 %v289
        %v344 = vunpack.c.l.b16 %v290
        %v345 = vunpack.c.l.b16 %v291
        %v346 = vunpack.c.l.b16 %v292
        %v347 = vunpack.c.l.b16 %v293
        %v348 = vunpack.c.l.b16 %v294
        %v349 = vunpack.c.l.b16 %v295
        %v350 = vunpack.c.l.b16 %v296
        %v351 = vunpack.c.l.b16 %v297
        %v352 = vunpack.c.l.b16 %v298
        %v353 = vunpack.c.l.b16 %v299
        %v354 = vpack.c.b16 %v339, %v338
        %v355 = vpack.c.b16 %v341, %v340
        %v356 = vpack.c.b16 %v343, %v342
        %v357 = vpack.c.b16 %v345, %v344
        %v358 = vpack.c.b16 %v347, %v346
        %v359 = vpack.c.b16 %v349, %v348
        %v360 = vpack.c.b16 %v351, %v350
        %v361 = vpack.c.b16 %v353, %v352
        %370 = vmatpush.bf16.msra.mxu0 %v361
        %371 = vmatpush.bf16.msra.mxu0 %v360
        %372 = vmatpush.bf16.msra.mxu0 %v359
        %373 = vmatpush.bf16.msra.mxu0 %v358
        %374 = vmatpush.bf16.msra.mxu0 %v357
        %375 = vmatpush.bf16.msra.mxu0 %v356
        %376 = vmatpush.bf16.msra.mxu0 %v355
        %377 = vmatpush.bf16.msra.mxu0 %v354
        %378 = vmatmul.bf16.gmra.mxu0 %v314
        %v379 = vpop.f32.mrf.mxu0
        %v380 = vadd.f32 0.0, %v379
        %v381 = vpop.f32.mrf.mxu0
        %v382 = vadd.f32 0.0, %v381
        %383 = vmatmul.bf16.gmra.mxu0 %v315
        %v384 = vpop.f32.mrf.mxu0
        %v385 = vadd.f32 0.0, %v384
        %v386 = vpop.f32.mrf.mxu0
        %v387 = vadd.f32 0.0, %v386
        %388 = vmatmul.bf16.gmra.mxu0 %v316
        %v389 = vpop.f32.mrf.mxu0
        %v390 = vadd.f32 0.0, %v389
        %v391 = vpop.f32.mrf.mxu0
        %v392 = vadd.f32 0.0, %v391
        %393 = vmatmul.bf16.gmra.mxu0 %v317
        %v394 = vpop.f32.mrf.mxu0
        %v395 = vadd.f32 0.0, %v394
        %v396 = vpop.f32.mrf.mxu0
        %397 = vdwg.mxu0
        %v398 = vadd.f32 %v270, %v380
        %v399 = vadd.f32 %v271, %v382
        %v400 = vadd.f32 %v272, %v385
        %v401 = vadd.f32 %v273, %v387
        %v402 = vadd.f32 %v274, %v390
        %v403 = vadd.f32 %v275, %v392
        %v404 = vadd.f32 %v276, %v395
        %405 = vst [vmem:[%s258] sm:$0xff] %v398
        %406 = vst [vmem:[%s258 + $0x8] sm:$0xff] %v399
        %407 = vst [vmem:[%s258 + $0x10] sm:$0xff] %v400
        %408 = vst [vmem:[%s258 + $0x18] sm:$0xff] %v401
        %409 = vst [vmem:[%s258 + $0x20] sm:$0xff] %v402
        %410 = vst [vmem:[%s258 + $0x28] sm:$0xff] %v403
        %411 = vst [vmem:[%s258 + $0x30] sm:$0x3] %v404
        %p412 = scmp.lt.s32.totalorder %s17, 1
        %s413 = scalar_select %p412, %s17, 1
        %s414 = smul.addr %s413, 7
        %s415 = smul.addr %s414, 8
        %s416 = scalar_lea.vmem %s2, %s415
        // Predicated region
        $region74: #{pyramid_pooling_forward.2} parent=64 // pred_check
          %p417 = pneg %p97
        $region75: #{pyramid_pooling_forward.2} parent=64 // pred_check_branch
          %419 = sbr.rel (%p417) target = $region77
        $region76: #{pyramid_pooling_forward.2} parent=64 // pred_region
          _
        $region77: #{pyramid_pooling_forward.2} parent=64 // pred_fallthru
          _
      $region65: #{pyramid_pooling_forward.2} parent=5 // pred_fallthru
        _
      %p420 = scmp.le.s32.totalorder 2, %s8
      // Predicated region
      $region78: #{pyramid_pooling_forward.2} parent=5 // pred_check
        %p421 = pneg %p420
      $region79: #{pyramid_pooling_forward.2} parent=5 // pred_check_branch
        %423 = sbr.rel (%p421) target = $region81
      $region80: #{pyramid_pooling_forward.2} parent=5 // pred_region
        %s424 = ssub.s32 %s8, 2
        // Predicated region
        $region82: #{pyramid_pooling_forward.2} parent=80 // pred_check
          %p425 = pneg %p103
        $region83: #{pyramid_pooling_forward.2} parent=80 // pred_check_branch
          %427 = sbr.rel (%p425) target = $region85
        $region84: #{pyramid_pooling_forward.2} parent=80 // pred_region
          %p428 = scmp.lt.s32.totalorder %s19, 1
          %s429 = scalar_select %p428, %s19, 1
          %s430 = smul.addr %s429, 7
          %s431 = smul.addr %s430, 8
          %s432 = scalar_lea.vmem %s2, %s431
        $region85: #{pyramid_pooling_forward.2} parent=80 // pred_fallthru
          _
      $region81: #{pyramid_pooling_forward.2} parent=5 // pred_fallthru
        _
    $region6: #{pyramid_pooling_forward.2} parent=1 // loop_footer
      %s12 = sadd.s32 1, %s8
    $region7: #{pyramid_pooling_forward.2} parent=1 // loop_footer_branch
      %7 = sbr.rel target = $region3
    $region8: #{pyramid_pooling_forward.2} parent=1 // loop_exit
      _

// kernel: pyramid_pooling_forward.3
$region0: #{pyramid_pooling_forward.3}
  #allocation0 [shape = 'u32[]', space=smem, size = 0x4, offset = 0x4, fixed_abs, tag = 'smem constant byte address 0x4 - core index']
  #allocation1 [shape = 'u32[72,128]{1,0:T(1,128)}', space=vmem, size = 0x9000, scoped, tag = 'internal scratch']
  %s0 = inlined_call_operand.vmem [shape: bf16[2,256,128], index: 0, kind: input, shape index: {}]
  %s1 = inlined_call_operand.vmem [shape: bf16[128,128], index: 1, kind: input, shape index: {}]
  %s2 = inlined_call_operand.vmem [shape: f32[16,12,128], index: 2, kind: input, shape index: {}]
  %s3 = inlined_call_operand.vmem [shape: f32[2,12,16,128], index: 3, kind: input, shape index: {}]
  %s4 = inlined_call_operand.vmem [shape: f32[1,128], index: 4, kind: input, shape index: {}]
  %s5 = inlined_call_operand.vmem [shape: f32[1,128], index: 5, kind: input, shape index: {}]
  %s6 = inlined_call_operand.hbm [shape: f32[2,16,16,128], index: 6, kind: output, shape index: {}]
  %s7 = sld [smem:[#allocation0]]
  $region57: #{pyramid_pooling_forward.3} parent=0
    _
  %s9 = ssub.s32 1, %s7
  %s10 = scalar_select 0, %s9, %s7
  $region1: #{pyramid_pooling_forward.3} parent=0
    #allocation2 [shape = 'u8[131072]{0}', space=vmem, size = 0x20000, scoped, tag = 'output window, operand 0']
    #allocation3 [shape = 's32[2]{0}', space=sflag, size = 0x8, scoped, tag = 'scoped memory for pyramid_pooling_forward.3']
    %11 = vsyncpa [#allocation3], 0
    %s12 = scalar_lea.sflag [#allocation3], 1
    %13 = vsyncpa %s12, 0
    loop: start=0, step=1, limit=6
    $region2: #{pyramid_pooling_forward.3} parent=1 // loop_pre_header
      _
    $region3: #{pyramid_pooling_forward.3} parent=1 // loop_header
      %s15 = sphi 0, %s19
      %p16 = scmp.ge.s32.totalorder %s15, 6
      %s22 = sphi 0, %s34
      %s23 = sphi 0, %s30
      %s24 = sphi 0, %s22
      %s25 = sphi 0, %s23
      %s26 = sphi 0, %s24
      %s27 = sphi 0, %s25
      %s39 = sphi 0, %s41
      %s42 = sphi 0, %s39
      %s43 = sphi 0, %s42
      %s59 = sphi 0, %s43
      %s63 = sphi 0, %s63
      %s65 = sphi 0, %s63
      %s66 = sphi 0, %s65
      %s80 = sphi 0, %s66
      %s86 = sphi 0, %s88
      %s89 = sphi 0, %s86
      %s90 = sphi 0, %s89
      %s106 = sphi 0, %s90
      %s112 = sphi 0, %s114
      %s115 = sphi 0, %s112
      %s116 = sphi 0, %s115
      %s132 = sphi 0, %s116
      %s136 = sphi 0, %s136
      %s138 = sphi 0, %s136
      %s139 = sphi 0, %s138
      %s153 = sphi 0, %s139
      %s157 = sphi 0, %s157
      %s159 = sphi 0, %s157
      %s160 = sphi 0, %s159
      %s174 = sphi 0, %s160
      %s182 = sphi 0, %s184
      %s185 = sphi 0, %s182
      %s186 = sphi 0, %s185
      %s202 = sphi 0, %s186
    $region4: #{pyramid_pooling_forward.3} parent=1 // loop_header_branch
      %18 = sbr.rel (%p16) target = $region8
    $region5: #{pyramid_pooling_forward.3} parent=1 // loop_body
      %s20 = ssub.s32 %s15, 1
      %s21 = ssub.s32 %s15, 2
      %s28 = sadd.s32 1, %s23
      %p29 = scmp.ge.s32.totalorder %s28, 2
      %s30 = scalar_select %p29, 0, %s28
      %s31 = sadd.s32 1, %s22
      %s32 = scalar_select %p29, %s31, %s22
      %p33 = scmp.ge.s32.totalorder %s32, 2
      %s34 = scalar_select %p33, 0, %s32
      %s35 = ssub.s32 %s22, %s34
      %s36 = ssub.s32 %s23, %s30
      %s37 = sor.u32 %s35, %s36
      %p38 = scmp.eq.s32.totalorder %s37, 0
      %s40 = sadd.s32 %s39, 1
      %s41 = scalar_select %p38, %s39, %s40
      %p44 = pneg %p38
      %p45 = scmp.eq.s32.totalorder %s15, 3
      %p46 = por %p44, %p45
      %p47 = scmp.ne.s32.totalorder %s39, %s42
      %p48 = scmp.eq.s32.totalorder %s15, 0
      %p49 = por %p47, %p48
      %p50 = scmp.ne.s32.totalorder %s39, %s42
      %p51 = scmp.eq.s32.totalorder %s20, 3
      %p52 = por %p50, %p51
      %p53 = scmp.ne.s32.totalorder %s42, %s43
      %p54 = scmp.eq.s32.totalorder %s20, 0
      %p55 = por %p53, %p54
      %p56 = scmp.ne.s32.totalorder %s42, %s43
      %p57 = scmp.eq.s32.totalorder %s21, 3
      %p58 = por %p56, %p57
      %p60 = scmp.ne.s32.totalorder %s43, %s59
      %p61 = scmp.eq.s32.totalorder %s21, 0
      %p62 = por %p60, %p61
      %s64 = sadd.s32 %s63, 1
      %p67 = scmp.eq.s32.totalorder %s15, 3
      %p68 = scmp.ne.s32.totalorder %s63, %s65
      %p69 = scmp.eq.s32.totalorder %s15, 0
      %p70 = por %p68, %p69
      %p71 = scmp.ne.s32.totalorder %s63, %s65
      %p72 = scmp.eq.s32.totalorder %s20, 3
      %p73 = por %p71, %p72
      %p74 = scmp.ne.s32.totalorder %s65, %s66
      %p75 = scmp.eq.s32.totalorder %s20, 0
      %p76 = por %p74, %p75
      %p77 = scmp.ne.s32.totalorder %s65, %s66
      %p78 = scmp.eq.s32.totalorder %s21, 3
      %p79 = por %p77, %p78
      %p81 = scmp.ne.s32.totalorder %s66, %s80
      %p82 = scmp.eq.s32.totalorder %s21, 0
      %p83 = por %p81, %p82
      %s84 = ssub.s32 %s23, %s30
      %p85 = scmp.eq.s32.totalorder %s84, 0
      %s87 = sadd.s32 %s86, 1
      %s88 = scalar_select %p85, %s86, %s87
      %p91 = pneg %p85
      %p92 = scmp.eq.s32.totalorder %s15, 3
      %p93 = por %p91, %p92
      %p94 = scmp.ne.s32.totalorder %s86, %s89
      %p95 = scmp.eq.s32.totalorder %s15, 0
      %p96 = por %p94, %p95
      %p97 = scmp.ne.s32.totalorder %s86, %s89
      %p98 = scmp.eq.s32.totalorder %s20, 3
      %p99 = por %p97, %p98
      %p100 = scmp.ne.s32.totalorder %s89, %s90
      %p101 = scmp.eq.s32.totalorder %s20, 0
      %p102 = por %p100, %p101
      %p103 = scmp.ne.s32.totalorder %s89, %s90
      %p104 = scmp.eq.s32.totalorder %s21, 3
      %p105 = por %p103, %p104
      %p107 = scmp.ne.s32.totalorder %s90, %s106
      %p108 = scmp.eq.s32.totalorder %s21, 0
      %p109 = por %p107, %p108
      %s110 = ssub.s32 %s22, %s34
      %p111 = scmp.eq.s32.totalorder %s110, 0
      %s113 = sadd.s32 %s112, 1
      %s114 = scalar_select %p111, %s112, %s113
      %p117 = pneg %p111
      %p118 = scmp.eq.s32.totalorder %s15, 3
      %p119 = por %p117, %p118
      %p120 = scmp.ne.s32.totalorder %s112, %s115
      %p121 = scmp.eq.s32.totalorder %s15, 0
      %p122 = por %p120, %p121
      %p123 = scmp.ne.s32.totalorder %s112, %s115
      %p124 = scmp.eq.s32.totalorder %s20, 3
      %p125 = por %p123, %p124
      %p126 = scmp.ne.s32.totalorder %s115, %s116
      %p127 = scmp.eq.s32.totalorder %s20, 0
      %p128 = por %p126, %p127
      %p129 = scmp.ne.s32.totalorder %s115, %s116
      %p130 = scmp.eq.s32.totalorder %s21, 3
      %p131 = por %p129, %p130
      %p133 = scmp.ne.s32.totalorder %s116, %s132
      %p134 = scmp.eq.s32.totalorder %s21, 0
      %p135 = por %p133, %p134
      %s137 = sadd.s32 %s136, 1
      %p140 = scmp.eq.s32.totalorder %s15, 3
      %p141 = scmp.ne.s32.totalorder %s136, %s138
      %p142 = scmp.eq.s32.totalorder %s15, 0
      %p143 = por %p141, %p142
      %p144 = scmp.ne.s32.totalorder %s136, %s138
      %p145 = scmp.eq.s32.totalorder %s20, 3
      %p146 = por %p144, %p145
      %p147 = scmp.ne.s32.totalorder %s138, %s139
      %p148 = scmp.eq.s32.totalorder %s20, 0
      %p149 = por %p147, %p148
      %p150 = scmp.ne.s32.totalorder %s138, %s139
      %p151 = scmp.eq.s32.totalorder %s21, 3
      %p152 = por %p150, %p151
      %p154 = scmp.ne.s32.totalorder %s139, %s153
      %p155 = scmp.eq.s32.totalorder %s21, 0
      %p156 = por %p154, %p155
      %s158 = sadd.s32 %s157, 1
      %p161 = scmp.eq.s32.totalorder %s15, 3
      %p162 = scmp.ne.s32.totalorder %s157, %s159
      %p163 = scmp.eq.s32.totalorder %s15, 0
      %p164 = por %p162, %p163
      %p165 = scmp.ne.s32.totalorder %s157, %s159
      %p166 = scmp.eq.s32.totalorder %s20, 3
      %p167 = por %p165, %p166
      %p168 = scmp.ne.s32.totalorder %s159, %s160
      %p169 = scmp.eq.s32.totalorder %s20, 0
      %p170 = por %p168, %p169
      %p171 = scmp.ne.s32.totalorder %s159, %s160
      %p172 = scmp.eq.s32.totalorder %s21, 3
      %p173 = por %p171, %p172
      %p175 = scmp.ne.s32.totalorder %s160, %s174
      %p176 = scmp.eq.s32.totalorder %s21, 0
      %p177 = por %p175, %p176
      %s178 = ssub.s32 %s22, %s34
      %s179 = ssub.s32 %s23, %s30
      %s180 = sor.u32 %s178, %s179
      %p181 = scmp.eq.s32.totalorder %s180, 0
      %s183 = sadd.s32 %s182, 1
      %s184 = scalar_select %p181, %s182, %s183
      %p187 = pneg %p181
      %p188 = scmp.eq.s32.totalorder %s15, 3
      %p189 = por %p187, %p188
      %p190 = scmp.ne.s32.totalorder %s182, %s185
      %p191 = scmp.eq.s32.totalorder %s15, 0
      %p192 = por %p190, %p191
      %p193 = scmp.ne.s32.totalorder %s182, %s185
      %p194 = scmp.eq.s32.totalorder %s20, 3
      %p195 = por %p193, %p194
      %p196 = scmp.ne.s32.totalorder %s185, %s186
      %p197 = scmp.eq.s32.totalorder %s20, 0
      %p198 = por %p196, %p197
      %p199 = scmp.ne.s32.totalorder %s185, %s186
      %p200 = scmp.eq.s32.totalorder %s21, 3
      %p201 = por %p199, %p200
      %p203 = scmp.ne.s32.totalorder %s186, %s202
      %p204 = scmp.eq.s32.totalorder %s21, 0
      %p205 = por %p203, %p204
      %p206 = scmp.le.s32.totalorder 1, %s15
      %p207 = scmp.lt.s32.totalorder %s15, 5
      %p208 = pnand %p206, %p207
      %p209 = pneg %p208
      // Predicated region
      $region9: #{pyramid_pooling_forward.3} parent=5 // pred_check
        _
      $region10: #{pyramid_pooling_forward.3} parent=5 // pred_check_branch
        %211 = sbr.rel (%p208) target = $region12
      $region11: #{pyramid_pooling_forward.3} parent=5 // pred_region
        %s212 = ssub.s32 %s15, 1
        // Predicated region
        $region13: #{pyramid_pooling_forward.3} parent=11 // pred_check
          %p213 = pneg %p76
        $region14: #{pyramid_pooling_forward.3} parent=11 // pred_check_branch
          %215 = sbr.rel (%p213) target = $region16
        $region15: #{pyramid_pooling_forward.3} parent=11 // pred_region
          _
        $region16: #{pyramid_pooling_forward.3} parent=11 // pred_fallthru
          _
        // Predicated region
        $region17: #{pyramid_pooling_forward.3} parent=11 // pred_check
          %p216 = pneg %p149
        $region18: #{pyramid_pooling_forward.3} parent=11 // pred_check_branch
          %218 = sbr.rel (%p216) target = $region20
        $region19: #{pyramid_pooling_forward.3} parent=11 // pred_region
          _
        $region20: #{pyramid_pooling_forward.3} parent=11 // pred_fallthru
          _
        // Predicated region
        $region21: #{pyramid_pooling_forward.3} parent=11 // pred_check
          %p219 = pneg %p170
        $region22: #{pyramid_pooling_forward.3} parent=11 // pred_check_branch
          %221 = sbr.rel (%p219) target = $region24
        $region23: #{pyramid_pooling_forward.3} parent=11 // pred_region
          _
        $region24: #{pyramid_pooling_forward.3} parent=11 // pred_fallthru
          _
      $region12: #{pyramid_pooling_forward.3} parent=5 // pred_fallthru
        _
      %p222 = scmp.lt.s32.totalorder %s15, 4
      // Predicated region
      $region25: #{pyramid_pooling_forward.3} parent=5 // pred_check
        %p223 = pneg %p222
      $region26: #{pyramid_pooling_forward.3} parent=5 // pred_check_branch
        %225 = sbr.rel (%p223) target = $region28
      $region27: #{pyramid_pooling_forward.3} parent=5 // pred_region
        // Predicated region
        $region29: #{pyramid_pooling_forward.3} parent=27 // pred_check
          %p226 = pneg %p49
        $region30: #{pyramid_pooling_forward.3} parent=27 // pred_check_branch
          %228 = sbr.rel (%p226) target = $region32
        $region31: #{pyramid_pooling_forward.3} parent=27 // pred_region
          %s229 = smul.u32 16, %s23
          %p230 = scmp.lt.s32.totalorder %s22, 1
          %s231 = scalar_select %p230, %s22, 1
          %p232 = scmp.lt.s32.totalorder %s229, 31
          %s233 = scalar_select %p232, %s229, 31
          %s234 = smul.addr %s231, 32
          %s235 = sadd.s32 %s233, %s234
          %s236 = smul.addr %s235, 4
          %s237 = scalar_lea.vmem %s0, %s236
          %s238 = smul.u32 16, %s23
        $region32: #{pyramid_pooling_forward.3} parent=27 // pred_fallthru
          _
        // Predicated region
        $region33: #{pyramid_pooling_forward.3} parent=27 // pred_check
          %p239 = pneg %p96
        $region34: #{pyramid_pooling_forward.3} parent=27 // pred_check_branch
          %241 = sbr.rel (%p239) target = $region36
        $region35: #{pyramid_pooling_forward.3} parent=27 // pred_region
          %s242 = smul.u32 8, %s23
          %p243 = scmp.lt.s32.totalorder %s242, 15
          %s244 = scalar_select %p243, %s242, 15
          %s245 = smul.addr %s244, 2
          %s246 = smul.addr %s245, 8
          %s247 = scalar_lea.vmem %s2, %s246
          %s248 = smul.u32 8, %s23
        $region36: #{pyramid_pooling_forward.3} parent=27 // pred_fallthru
          _
        // Predicated region
        $region37: #{pyramid_pooling_forward.3} parent=27 // pred_check
          %p249 = pneg %p122
        $region38: #{pyramid_pooling_forward.3} parent=27 // pred_check_branch
          %251 = sbr.rel (%p249) target = $region40
        $region39: #{pyramid_pooling_forward.3} parent=27 // pred_region
          %p252 = scmp.lt.s32.totalorder %s22, 1
          %s253 = scalar_select %p252, %s22, 1
          %s254 = smul.addr %s253, 24
          %s255 = smul.addr %s254, 8
          %s256 = scalar_lea.vmem %s3, %s255
        $region40: #{pyramid_pooling_forward.3} parent=27 // pred_fallthru
          _
      $region28: #{pyramid_pooling_forward.3} parent=5 // pred_fallthru
        _
      %p257 = scmp.le.s32.totalorder 1, %s15
      %p258 = scmp.lt.s32.totalorder %s15, 5
      %p259 = pnand %p257, %p258
      %p260 = pneg %p259
      // Predicated region
      $region41: #{pyramid_pooling_forward.3} parent=5 // pred_check
        _
      $region42: #{pyramid_pooling_forward.3} parent=5 // pred_check_branch
        %262 = sbr.rel (%p259) target = $region44
      $region43: #{pyramid_pooling_forward.3} parent=5 // pred_region
        %s263 = ssub.s32 %s15, 1
        %s264 = smul.u32 16, %s25
        %p265 = scmp.lt.s32.totalorder %s24, 1
        %s266 = scalar_select %p265, %s24, 1
        %p267 = scmp.lt.s32.totalorder %s264, 31
        %s268 = scalar_select %p267, %s264, 31
        %s269 = smul.addr %s266, 32
        %s270 = sadd.s32 %s268, %s269
        %s271 = smul.addr %s270, 4
        %s272 = scalar_lea.vmem %s0, %s271
        %p273 = pneg %p55
        %p274 = pneg %p52
        %p275 = pneg %p76
        %p276 = pneg %p73
        %s277 = smul.u32 8, %s25
        %p278 = scmp.lt.s32.totalorder %s277, 15
        %s279 = scalar_select %p278, %s277, 15
        %s280 = smul.addr %s279, 2
        %s281 = smul.addr %s280, 8
        %s282 = scalar_lea.vmem %s2, %s281
        %p283 = pneg %p102
        %p284 = pneg %p99
        %p285 = scmp.lt.s32.totalorder %s24, 1
        %s286 = scalar_select %p285, %s24, 1
        %s287 = smul.addr %s286, 24
        %s288 = smul.addr %s287, 8
        %s289 = scalar_lea.vmem %s3, %s288
        %p290 = pneg %p128
        %p291 = pneg %p125
        %p292 = pneg %p149
        %p293 = pneg %p146
        %p294 = pneg %p170
        %p295 = pneg %p167
        %p296 = pneg %p198
        %p297 = pneg %p195
        %s298 = sand.u32 %s185, 1
        %s299 = scalar_lea.sflag [#allocation3], %s298
        %s300 = sand.u32 %s185, 1
        %s301 = smul.addr %s300, 128
        %s302 = scalar_lea.vmem [#allocation2], %s301
        %s303 = smul.u32 16, %s25
        %p304 = scmp.lt.s32.totalorder %s24, 1
        %s305 = scalar_select %p304, %s24, 1
        %p306 = scmp.lt.s32.totalorder %s303, 31
        %s307 = scalar_select %p306, %s303, 31
        %s308 = smul.addr %s305, 32
        %s309 = sadd.s32 %s307, %s308
        %s310 = smul.addr %s309, 4
        %s311 = scalar_lea.vmem %s0, %s310
        %s312 = smul.u32 16, %s25
        %s313 = smul.u32 8, %s25
        %p314 = scmp.lt.s32.totalorder %s313, 15
        %s315 = scalar_select %p314, %s313, 15
        %s316 = smul.addr %s315, 2
        %s317 = smul.addr %s316, 8
        %s318 = scalar_lea.vmem %s2, %s317
        %s319 = smul.u32 8, %s25
        %p320 = scmp.lt.s32.totalorder %s24, 1
        %s321 = scalar_select %p320, %s24, 1
        %s322 = smul.addr %s321, 24
        %s323 = smul.addr %s322, 8
        %s324 = scalar_lea.vmem %s3, %s323
        %s325 = smul.u32 8, %s25
        %v326 = vld [vmem:[%s311] sm:$0xf]
        %v327 = vld [vmem:[%s311 + $0x4] sm:$0xf]
        %v328 = vld [vmem:[%s311 + $0x8] sm:$0xf]
        %v329 = vld [vmem:[%s311 + $0xc] sm:$0xf]
        %v330 = vld [vmem:[%s311 + $0x10] sm:$0xf]
        %v331 = vld [vmem:[%s311 + $0x14] sm:$0xf]
        %v332 = vld [vmem:[%s311 + $0x18] sm:$0xf]
        %v333 = vld [vmem:[%s311 + $0x1c] sm:$0xf]
        %v334 = vld [vmem:[%s311 + $0x20] sm:$0xf]
        %v335 = vld [vmem:[%s311 + $0x24] sm:$0xf]
        %v336 = vld [vmem:[%s311 + $0x28] sm:$0xf]
        %v337 = vld [vmem:[%s311 + $0x2c] sm:$0xf]
        %v338 = vld [vmem:[%s311 + $0x30] sm:$0xf]
        %v339 = vld [vmem:[%s311 + $0x34] sm:$0xf]
        %v340 = vld [vmem:[%s311 + $0x38] sm:$0xf]
        %v341 = vld [vmem:[%s311 + $0x3c] sm:$0xf]
        %v342 = vld [vmem:[%s1] sm:$0xf]
        %v343 = vld [vmem:[%s1 + $0x4] sm:$0xf]
        %v344 = vld [vmem:[%s1 + $0x8] sm:$0xf]
        %v345 = vld [vmem:[%s1 + $0xc] sm:$0xf]
        %v346 = vld [vmem:[%s1 + $0x10] sm:$0xf]
        %v347 = vld [vmem:[%s1 + $0x14] sm:$0xf]
        %v348 = vld [vmem:[%s1 + $0x18] sm:$0xf]
        %v349 = vld [vmem:[%s1 + $0x1c] sm:$0xf]
        %v350 = vld [vmem:[%s1 + $0x20] sm:$0xf]
        %v351 = vld [vmem:[%s1 + $0x24] sm:$0xf]
        %v352 = vld [vmem:[%s1 + $0x28] sm:$0xf]
        %v353 = vld [vmem:[%s1 + $0x2c] sm:$0xf]
        %v354 = vld [vmem:[%s1 + $0x30] sm:$0xf]
        %v355 = vld [vmem:[%s1 + $0x34] sm:$0xf]
        %v356 = vld [vmem:[%s1 + $0x38] sm:$0xf]
        %v357 = vld [vmem:[%s1 + $0x3c] sm:$0xf]
        %v374 = vunpack.c.l.b16 %v326
        %v375 = vunpack.c.l.b16 %v327
        %v376 = vunpack.c.l.b16 %v328
        %v377 = vunpack.c.l.b16 %v329
        %v378 = vunpack.c.l.b16 %v330
        %v379 = vunpack.c.l.b16 %v331
        %v380 = vunpack.c.l.b16 %v332
        %v381 = vunpack.c.l.b16 %v333
        %v382 = vunpack.c.l.b16 %v334
        %v383 = vunpack.c.l.b16 %v335
        %v384 = vunpack.c.l.b16 %v336
        %v385 = vunpack.c.l.b16 %v337
        %v386 = vunpack.c.l.b16 %v338
        %v387 = vunpack.c.l.b16 %v339
        %v388 = vunpack.c.l.b16 %v340
        %v389 = vunpack.c.l.b16 %v341
        %v390 = vpack.c.b16 %v375, %v374
        %v391 = vpack.c.b16 %v377, %v376
        %v392 = vpack.c.b16 %v379, %v378
        %v393 = vpack.c.b16 %v381, %v380
        %v394 = vpack.c.b16 %v383, %v382
        %v395 = vpack.c.b16 %v385, %v384
        %v396 = vpack.c.b16 %v387, %v386
        %v397 = vpack.c.b16 %v389, %v388
        %v422 = vunpack.c.l.b16 %v342
        %v423 = vunpack.c.l.b16 %v343
        %v424 = vunpack.c.l.b16 %v344
        %v425 = vunpack.c.l.b16 %v345
        %v426 = vunpack.c.l.b16 %v346
        %v427 = vunpack.c.l.b16 %v347
        %v428 = vunpack.c.l.b16 %v348
        %v429 = vunpack.c.l.b16 %v349
        %v430 = vunpack.c.l.b16 %v350
        %v431 = vunpack.c.l.b16 %v351
        %v432 = vunpack.c.l.b16 %v352
        %v433 = vunpack.c.l.b16 %v353
        %v434 = vunpack.c.l.b16 %v354
        %v435 = vunpack.c.l.b16 %v355
        %v436 = vunpack.c.l.b16 %v356
        %v437 = vunpack.c.l.b16 %v357
        %v438 = vpack.c.b16 %v423, %v422
        %v439 = vpack.c.b16 %v425, %v424
        %v440 = vpack.c.b16 %v427, %v426
        %v441 = vpack.c.b16 %v429, %v428
        %v442 = vpack.c.b16 %v431, %v430
        %v443 = vpack.c.b16 %v433, %v432
        %v444 = vpack.c.b16 %v435, %v434
        %v445 = vpack.c.b16 %v437, %v436
        %454 = vmatpush.bf16.msra.mxu0 %v445
        %455 = vmatpush.bf16.msra.mxu0 %v444
        %456 = vmatpush.bf16.msra.mxu0 %v443
        %457 = vmatpush.bf16.msra.mxu0 %v442
        %458 = vmatpush.bf16.msra.mxu0 %v441
        %459 = vmatpush.bf16.msra.mxu0 %v440
        %460 = vmatpush.bf16.msra.mxu0 %v439
        %461 = vmatpush.bf16.msra.mxu0 %v438
        %462 = vmatmul.bf16.gmra.mxu0 %v390
        %v463 = vpop.f32.mrf.mxu0
        %v464 = vadd.f32 0.0, %v463
        %v465 = vpop.f32.mrf.mxu0
        %v466 = vadd.f32 0.0, %v465
        %467 = vmatmul.bf16.gmra.mxu0 %v391
        %v468 = vpop.f32.mrf.mxu0
        %v469 = vadd.f32 0.0, %v468
        %v470 = vpop.f32.mrf.mxu0
        %v471 = vadd.f32 0.0, %v470
        %472 = vmatmul.bf16.gmra.mxu0 %v392
        %v473 = vpop.f32.mrf.mxu0
        %v474 = vadd.f32 0.0, %v473
        %v475 = vpop.f32.mrf.mxu0
        %v476 = vadd.f32 0.0, %v475
        %477 = vmatmul.bf16.gmra.mxu0 %v393
        %v478 = vpop.f32.mrf.mxu0
        %v479 = vadd.f32 0.0, %v478
        %v480 = vpop.f32.mrf.mxu0
        %v481 = vadd.f32 0.0, %v480
        %482 = vmatmul.bf16.gmra.mxu0 %v394
        %v483 = vpop.f32.mrf.mxu0
        %v484 = vadd.f32 0.0, %v483
        %v485 = vpop.f32.mrf.mxu0
        %v486 = vadd.f32 0.0, %v485
        %487 = vmatmul.bf16.gmra.mxu0 %v395
        %v488 = vpop.f32.mrf.mxu0
        %v489 = vadd.f32 0.0, %v488
        %v490 = vpop.f32.mrf.mxu0
        %v491 = vadd.f32 0.0, %v490
        %492 = vmatmul.bf16.gmra.mxu0 %v396
        %v493 = vpop.f32.mrf.mxu0
        %v494 = vadd.f32 0.0, %v493
        %v495 = vpop.f32.mrf.mxu0
        %v496 = vadd.f32 0.0, %v495
        %497 = vmatmul.bf16.gmra.mxu0 %v397
        %v498 = vpop.f32.mrf.mxu0
        %v499 = vadd.f32 0.0, %v498
        %v500 = vpop.f32.mrf.mxu0
        %v501 = vadd.f32 0.0, %v500
        %502 = vdwg.mxu0
        %v503 = vld [vmem:[%s318] sm:$0xff]
        %v504 = vld [vmem:[%s318 + $0x8] sm:$0xf]
        %v505 = vld [vmem:[%s318 + $0x10] sm:$0xff]
        %v506 = vld [vmem:[%s318 + $0x18] sm:$0xf]
        %v507 = vld [vmem:[%s318 + $0x20] sm:$0xff]
        %v508 = vld [vmem:[%s318 + $0x28] sm:$0xf]
        %v509 = vld [vmem:[%s318 + $0x30] sm:$0xff]
        %v510 = vld [vmem:[%s318 + $0x38] sm:$0xf]
        %v511 = vld [vmem:[%s318 + $0x40] sm:$0xff]
        %v512 = vld [vmem:[%s318 + $0x48] sm:$0xf]
        %v513 = vld [vmem:[%s318 + $0x50] sm:$0xff]
        %v514 = vld [vmem:[%s318 + $0x58] sm:$0xf]
        %v515 = vld [vmem:[%s318 + $0x60] sm:$0xff]
        %v516 = vld [vmem:[%s318 + $0x68] sm:$0xf]
        %v517 = vld [vmem:[%s318 + $0x70] sm:$0xff]
        %v518 = vld [vmem:[%s318 + $0x78] sm:$0xf]
        %v519 = vld [vmem:[%s324] sm:$0xff]
        %v520 = vld [vmem:[%s324 + $0x8] sm:$0xff]
        %v521 = vld [vmem:[%s324 + $0x10] sm:$0xff]
        %v522 = vld [vmem:[%s324 + $0x18] sm:$0xff]
        %v523 = vld [vmem:[%s324 + $0x20] sm:$0xff]
        %v524 = vld [vmem:[%s324 + $0x28] sm:$0xff]
        %v525 = vld [vmem:[%s324 + $0x30] sm:$0xff]
        %v526 = vld [vmem:[%s324 + $0x38] sm:$0xff]
        %v527 = vld [vmem:[%s324 + $0x40] sm:$0xff]
        %v528 = vld [vmem:[%s324 + $0x48] sm:$0xff]
        %v529 = vld [vmem:[%s324 + $0x50] sm:$0xff]
        %v530 = vld [vmem:[%s324 + $0x58] sm:$0xff]
        %v531 = vld [vmem:[%s324 + $0x60] sm:$0xff]
        %v532 = vld [vmem:[%s324 + $0x68] sm:$0xff]
        %v533 = vld [vmem:[%s324 + $0x70] sm:$0xff]
        %v534 = vld [vmem:[%s324 + $0x78] sm:$0xff]
        %v535 = vld [vmem:[%s324 + $0x80] sm:$0xff]
        %v536 = vld [vmem:[%s324 + $0x88] sm:$0xff]
        %v537 = vld [vmem:[%s324 + $0x90] sm:$0xff]
        %v538 = vld [vmem:[%s324 + $0x98] sm:$0xff]
        %v539 = vld [vmem:[%s324 + $0xa0] sm:$0xff]
        %v540 = vld [vmem:[%s324 + $0xa8] sm:$0xff]
        %v541 = vld [vmem:[%s324 + $0xb0] sm:$0xff]
        %v542 = vld [vmem:[%s324 + $0xb8] sm:$0xff]
        %v543 = vperm.slane %v503, 0
        %v544 = vperm.slane %v505, 0
        %v545 = vperm.slane %v507, 0
        %v546 = vperm.slane %v509, 0
        %v547 = vperm.slane %v511, 0
        %v548 = vperm.slane %v513, 0
        %v549 = vperm.slane %v515, 0
        %v550 = vperm.slane %v517, 0
        %v551 = vmul.f32 %v543, %v519
        %v552 = vmul.f32 %v543, %v520
        %v553 = vmul.f32 %v544, %v519
        %v554 = vmul.f32 %v544, %v520
        %v555 = vmul.f32 %v545, %v519
        %v556 = vmul.f32 %v545, %v520
        %v557 = vmul.f32 %v546, %v519
        %v558 = vmul.f32 %v546, %v520
        %v559 = vmul.f32 %v547, %v519
        %v560 = vmul.f32 %v547, %v520
        %v561 = vmul.f32 %v548, %v519
        %v562 = vmul.f32 %v548, %v520
        %v563 = vmul.f32 %v549, %v519
        %v564 = vmul.f32 %v549, %v520
        %v565 = vmul.f32 %v550, %v519
        %v566 = vmul.f32 %v550, %v520
        %v567 = vadd.f32 %v464, %v551
        %v568 = vadd.f32 %v466, %v552
        %v569 = vadd.f32 %v469, %v553
        %v570 = vadd.f32 %v471, %v554
        %v571 = vadd.f32 %v474, %v555
        %v572 = vadd.f32 %v476, %v556
        %v573 = vadd.f32 %v479, %v557
        %v574 = vadd.f32 %v481, %v558
        %v575 = vadd.f32 %v484, %v559
        %v576 = vadd.f32 %v486, %v560
        %v577 = vadd.f32 %v489, %v561
        %v578 = vadd.f32 %v491, %v562
        %v579 = vadd.f32 %v494, %v563
        %v580 = vadd.f32 %v496, %v564
        %v581 = vadd.f32 %v499, %v565
        %v582 = vadd.f32 %v501, %v566
        %v583 = vperm.slane %v503, 1
        %v584 = vperm.slane %v505, 1
        %v585 = vperm.slane %v507, 1
        %v586 = vperm.slane %v509, 1
        %v587 = vperm.slane %v511, 1
        %v588 = vperm.slane %v513, 1
        %v589 = vperm.slane %v515, 1
        %v590 = vperm.slane %v517, 1
        %v591 = vmul.f32 %v583, %v521
        %v592 = vmul.f32 %v583, %v522
        %v593 = vmul.f32 %v584, %v521
        %v594 = vmul.f32 %v584, %v522
        %v595 = vmul.f32 %v585, %v521
        %v596 = vmul.f32 %v585, %v522
        %v597 = vmul.f32 %v586, %v521
        %v598 = vmul.f32 %v586, %v522
        %v599 = vmul.f32 %v587, %v521
        %v600 = vmul.f32 %v587, %v522
        %v601 = vmul.f32 %v588, %v521
        %v602 = vmul.f32 %v588, %v522
        %v603 = vmul.f32 %v589, %v521
        %v604 = vmul.f32 %v589, %v522
        %v605 = vmul.f32 %v590, %v521
        %v606 = vmul.f32 %v590, %v522
        %v607 = vadd.f32 %v567, %v591
        %v608 = vadd.f32 %v568, %v592
        %v609 = vadd.f32 %v569, %v593
        %v610 = vadd.f32 %v570, %v594
        %v611 = vadd.f32 %v571, %v595
        %v612 = vadd.f32 %v572, %v596
        %v613 = vadd.f32 %v573, %v597
        %v614 = vadd.f32 %v574, %v598
        %v615 = vadd.f32 %v575, %v599
        %v616 = vadd.f32 %v576, %v600
        %v617 = vadd.f32 %v577, %v601
        %v618 = vadd.f32 %v578, %v602
        %v619 = vadd.f32 %v579, %v603
        %v620 = vadd.f32 %v580, %v604
        %v621 = vadd.f32 %v581, %v605
        %v622 = vadd.f32 %v582, %v606
        %v623 = vperm.slane %v503, 2
        %v624 = vperm.slane %v505, 2
        %v625 = vperm.slane %v507, 2
        %v626 = vperm.slane %v509, 2
        %v627 = vperm.slane %v511, 2
        %v628 = vperm.slane %v513, 2
        %v629 = vperm.slane %v515, 2
        %v630 = vperm.slane %v517, 2
        %v631 = vmul.f32 %v623, %v523
        %v632 = vmul.f32 %v623, %v524
        %v633 = vmul.f32 %v624, %v523
        %v634 = vmul.f32 %v624, %v524
        %v635 = vmul.f32 %v625, %v523
        %v636 = vmul.f32 %v625, %v524
        %v637 = vmul.f32 %v626, %v523
        %v638 = vmul.f32 %v626, %v524
        %v639 = vmul.f32 %v627, %v523
        %v640 = vmul.f32 %v627, %v524
        %v641 = vmul.f32 %v628, %v523
        %v642 = vmul.f32 %v628, %v524
        %v643 = vmul.f32 %v629, %v523
        %v644 = vmul.f32 %v629, %v524
        %v645 = vmul.f32 %v630, %v523
        %v646 = vmul.f32 %v630, %v524
        %v647 = vadd.f32 %v607, %v631
        %v648 = vadd.f32 %v608, %v632
        %v649 = vadd.f32 %v609, %v633
        %v650 = vadd.f32 %v610, %v634
        %v651 = vadd.f32 %v611, %v635
        %v652 = vadd.f32 %v612, %v636
        %v653 = vadd.f32 %v613, %v637
        %v654 = vadd.f32 %v614, %v638
        %v655 = vadd.f32 %v615, %v639
        %v656 = vadd.f32 %v616, %v640
        %v657 = vadd.f32 %v617, %v641
        %v658 = vadd.f32 %v618, %v642
        %v659 = vadd.f32 %v619, %v643
        %v660 = vadd.f32 %v620, %v644
        %v661 = vadd.f32 %v621, %v645
        %v662 = vadd.f32 %v622, %v646
        %v663 = vperm.slane %v503, 3
        %v664 = vperm.slane %v505, 3
        %v665 = vperm.slane %v507, 3
        %v666 = vperm.slane %v509, 3
        %v667 = vperm.slane %v511, 3
        %v668 = vperm.slane %v513, 3
        %v669 = vperm.slane %v515, 3
        %v670 = vperm.slane %v517, 3
        %v671 = vmul.f32 %v663, %v525
        %v672 = vmul.f32 %v663, %v526
        %v673 = vmul.f32 %v664, %v525
        %v674 = vmul.f32 %v664, %v526
        %v675 = vmul.f32 %v665, %v525
        %v676 = vmul.f32 %v665, %v526
        %v677 = vmul.f32 %v666, %v525
        %v678 = vmul.f32 %v666, %v526
        %v679 = vmul.f32 %v667, %v525
        %v680 = vmul.f32 %v667, %v526
        %v681 = vmul.f32 %v668, %v525
        %v682 = vmul.f32 %v668, %v526
        %v683 = vmul.f32 %v669, %v525
        %v684 = vmul.f32 %v669, %v526
        %v685 = vmul.f32 %v670, %v525
        %v686 = vmul.f32 %v670, %v526
        %v687 = vadd.f32 %v647, %v671
        %v688 = vadd.f32 %v648, %v672
        %v689 = vadd.f32 %v649, %v673
        %v690 = vadd.f32 %v650, %v674
        %v691 = vadd.f32 %v651, %v675
        %v692 = vadd.f32 %v652, %v676
        %v693 = vadd.f32 %v653, %v677
        %v694 = vadd.f32 %v654, %v678
        %v695 = vadd.f32 %v655, %v679
        %v696 = vadd.f32 %v656, %v680
        %v697 = vadd.f32 %v657, %v681
        %v698 = vadd.f32 %v658, %v682
        %v699 = vadd.f32 %v659, %v683
        %v700 = vadd.f32 %v660, %v684
        %v701 = vadd.f32 %v661, %v685
        %v702 = vadd.f32 %v662, %v686
        %v703 = vperm.slane %v503, 4
        %v704 = vperm.slane %v505, 4
        %v705 = vperm.slane %v507, 4
        %v706 = vperm.slane %v509, 4
        %v707 = vperm.slane %v511, 4
        %v708 = vperm.slane %v513, 4
        %v709 = vperm.slane %v515, 4
        %v710 = vperm.slane %v517, 4
        %v711 = vmul.f32 %v703, %v527
        %v712 = vmul.f32 %v703, %v528
        %v713 = vmul.f32 %v704, %v527
        %v714 = vmul.f32 %v704, %v528
        %v715 = vmul.f32 %v705, %v527
        %v716 = vmul.f32 %v705, %v528
        %v717 = vmul.f32 %v706, %v527
        %v718 = vmul.f32 %v706, %v528
        %v719 = vmul.f32 %v707, %v527
        %v720 = vmul.f32 %v707, %v528
        %v721 = vmul.f32 %v708, %v527
        %v722 = vmul.f32 %v708, %v528
        %v723 = vmul.f32 %v709, %v527
        %v724 = vmul.f32 %v709, %v528
        %v725 = vmul.f32 %v710, %v527
        %v726 = vmul.f32 %v710, %v528
        %v727 = vadd.f32 %v687, %v711
        %v728 = vadd.f32 %v688, %v712
        %v729 = vadd.f32 %v689, %v713
        %v730 = vadd.f32 %v690, %v714
        %v731 = vadd.f32 %v691, %v715
        %v732 = vadd.f32 %v692, %v716
        %v733 = vadd.f32 %v693, %v717
        %v734 = vadd.f32 %v694, %v718
        %v735 = vadd.f32 %v695, %v719
        %v736 = vadd.f32 %v696, %v720
        %v737 = vadd.f32 %v697, %v721
        %v738 = vadd.f32 %v698, %v722
        %v739 = vadd.f32 %v699, %v723
        %v740 = vadd.f32 %v700, %v724
        %v741 = vadd.f32 %v701, %v725
        %v742 = vadd.f32 %v702, %v726
        %v743 = vperm.slane %v503, 5
        %v744 = vperm.slane %v505, 5
        %v745 = vperm.slane %v507, 5
        %v746 = vperm.slane %v509, 5
        %v747 = vperm.slane %v511, 5
        %v748 = vperm.slane %v513, 5
        %v749 = vperm.slane %v515, 5
        %v750 = vperm.slane %v517, 5
        %v751 = vmul.f32 %v743, %v529
        %v752 = vmul.f32 %v743, %v530
        %v753 = vmul.f32 %v744, %v529
        %v754 = vmul.f32 %v744, %v530
        %v755 = vmul.f32 %v745, %v529
        %v756 = vmul.f32 %v745, %v530
        %v757 = vmul.f32 %v746, %v529
        %v758 = vmul.f32 %v746, %v530
        %v759 = vmul.f32 %v747, %v529
        %v760 = vmul.f32 %v747, %v530
        %v761 = vmul.f32 %v748, %v529
        %v762 = vmul.f32 %v748, %v530
        %v763 = vmul.f32 %v749, %v529
        %v764 = vmul.f32 %v749, %v530
        %v765 = vmul.f32 %v750, %v529
        %v766 = vmul.f32 %v750, %v530
        %v767 = vadd.f32 %v727, %v751
        %v768 = vadd.f32 %v728, %v752
        %v769 = vadd.f32 %v729, %v753
        %v770 = vadd.f32 %v730, %v754
        %v771 = vadd.f32 %v731, %v755
        %v772 = vadd.f32 %v732, %v756
        %v773 = vadd.f32 %v733, %v757
        %v774 = vadd.f32 %v734, %v758
        %v775 = vadd.f32 %v735, %v759
        %v776 = vadd.f32 %v736, %v760
        %v777 = vadd.f32 %v737, %v761
        %v778 = vadd.f32 %v738, %v762
        %v779 = vadd.f32 %v739, %v763
        %v780 = vadd.f32 %v740, %v764
        %v781 = vadd.f32 %v741, %v765
        %v782 = vadd.f32 %v742, %v766
        %v783 = vperm.slane %v503, 6
        %v784 = vperm.slane %v505, 6
        %v785 = vperm.slane %v507, 6
        %v786 = vperm.slane %v509, 6
        %v787 = vperm.slane %v511, 6
        %v788 = vperm.slane %v513, 6
        %v789 = vperm.slane %v515, 6
        %v790 = vperm.slane %v517, 6
        %v791 = vmul.f32 %v783, %v531
        %v792 = vmul.f32 %v783, %v532
        %v793 = vmul.f32 %v784, %v531
        %v794 = vmul.f32 %v784, %v532
        %v795 = vmul.f32 %v785, %v531
        %v796 = vmul.f32 %v785, %v532
        %v797 = vmul.f32 %v786, %v531
        %v798 = vmul.f32 %v786, %v532
        %v799 = vmul.f32 %v787, %v531
        %v800 = vmul.f32 %v787, %v532
        %v801 = vmul.f32 %v788, %v531
        %v802 = vmul.f32 %v788, %v532
        %v803 = vmul.f32 %v789, %v531
        %v804 = vmul.f32 %v789, %v532
        %v805 = vmul.f32 %v790, %v531
        %v806 = vmul.f32 %v790, %v532
        %v807 = vadd.f32 %v767, %v791
        %v808 = vadd.f32 %v768, %v792
        %v809 = vadd.f32 %v769, %v793
        %v810 = vadd.f32 %v770, %v794
        %v811 = vadd.f32 %v771, %v795
        %v812 = vadd.f32 %v772, %v796
        %v813 = vadd.f32 %v773, %v797
        %v814 = vadd.f32 %v774, %v798
        %v815 = vadd.f32 %v775, %v799
        %v816 = vadd.f32 %v776, %v800
        %v817 = vadd.f32 %v777, %v801
        %v818 = vadd.f32 %v778, %v802
        %v819 = vadd.f32 %v779, %v803
        %v820 = vadd.f32 %v780, %v804
        %v821 = vadd.f32 %v781, %v805
        %v822 = vadd.f32 %v782, %v806
        %v823 = vperm.slane %v503, 7
        %v824 = vperm.slane %v505, 7
        %v825 = vperm.slane %v507, 7
        %v826 = vperm.slane %v509, 7
        %v827 = vperm.slane %v511, 7
        %v828 = vperm.slane %v513, 7
        %v829 = vperm.slane %v515, 7
        %v830 = vperm.slane %v517, 7
        %v831 = vmul.f32 %v823, %v533
        %v832 = vmul.f32 %v823, %v534
        %v833 = vmul.f32 %v824, %v533
        %v834 = vmul.f32 %v824, %v534
        %v835 = vmul.f32 %v825, %v533
        %v836 = vmul.f32 %v825, %v534
        %v837 = vmul.f32 %v826, %v533
        %v838 = vmul.f32 %v826, %v534
        %v839 = vmul.f32 %v827, %v533
        %v840 = vmul.f32 %v827, %v534
        %v841 = vmul.f32 %v828, %v533
        %v842 = vmul.f32 %v828, %v534
        %v843 = vmul.f32 %v829, %v533
        %v844 = vmul.f32 %v829, %v534
        %v845 = vmul.f32 %v830, %v533
        %v846 = vmul.f32 %v830, %v534
        %v847 = vadd.f32 %v807, %v831
        %v848 = vadd.f32 %v808, %v832
        %v849 = vadd.f32 %v809, %v833
        %v850 = vadd.f32 %v810, %v834
        %v851 = vadd.f32 %v811, %v835
        %v852 = vadd.f32 %v812, %v836
        %v853 = vadd.f32 %v813, %v837
        %v854 = vadd.f32 %v814, %v838
        %v855 = vadd.f32 %v815, %v839
        %v856 = vadd.f32 %v816, %v840
        %v857 = vadd.f32 %v817, %v841
        %v858 = vadd.f32 %v818, %v842
        %v859 = vadd.f32 %v819, %v843
        %v860 = vadd.f32 %v820, %v844
        %v861 = vadd.f32 %v821, %v845
        %v862 = vadd.f32 %v822, %v846
        %v863 = vperm.slane %v504, 0
        %v864 = vperm.slane %v506, 0
        %v865 = vperm.slane %v508, 0
        %v866 = vperm.slane %v510, 0
        %v867 = vperm.slane %v512, 0
        %v868 = vperm.slane %v514, 0
        %v869 = vperm.slane %v516, 0
        %v870 = vperm.slane %v518, 0
        %v871 = vmul.f32 %v863, %v535
        %v872 = vmul.f32 %v863, %v536
        %v873 = vmul.f32 %v864, %v535
        %v874 = vmul.f32 %v864, %v536
        %v875 = vmul.f32 %v865, %v535
        %v876 = vmul.f32 %v865, %v536
        %v877 = vmul.f32 %v866, %v535
        %v878 = vmul.f32 %v866, %v536
        %v879 = vmul.f32 %v867, %v535
        %v880 = vmul.f32 %v867, %v536
        %v881 = vmul.f32 %v868, %v535
        %v882 = vmul.f32 %v868, %v536
        %v883 = vmul.f32 %v869, %v535
        %v884 = vmul.f32 %v869, %v536
        %v885 = vmul.f32 %v870, %v535
        %v886 = vmul.f32 %v870, %v536
        %v887 = vadd.f32 %v847, %v871
        %v888 = vadd.f32 %v848, %v872
        %v889 = vadd.f32 %v849, %v873
        %v890 = vadd.f32 %v850, %v874
        %v891 = vadd.f32 %v851, %v875
        %v892 = vadd.f32 %v852, %v876
        %v893 = vadd.f32 %v853, %v877
        %v894 = vadd.f32 %v854, %v878
        %v895 = vadd.f32 %v855, %v879
        %v896 = vadd.f32 %v856, %v880
        %v897 = vadd.f32 %v857, %v881
        %v898 = vadd.f32 %v858, %v882
        %v899 = vadd.f32 %v859, %v883
        %v900 = vadd.f32 %v860, %v884
        %v901 = vadd.f32 %v861, %v885
        %v902 = vadd.f32 %v862, %v886
        %v903 = vperm.slane %v504, 1
        %v904 = vperm.slane %v506, 1
        %v905 = vperm.slane %v508, 1
        %v906 = vperm.slane %v510, 1
        %v907 = vperm.slane %v512, 1
        %v908 = vperm.slane %v514, 1
        %v909 = vperm.slane %v516, 1
        %v910 = vperm.slane %v518, 1
        %v911 = vmul.f32 %v903, %v537
        %v912 = vmul.f32 %v903, %v538
        %v913 = vmul.f32 %v904, %v537
        %v914 = vmul.f32 %v904, %v538
        %v915 = vmul.f32 %v905, %v537
        %v916 = vmul.f32 %v905, %v538
        %v917 = vmul.f32 %v906, %v537
        %v918 = vmul.f32 %v906, %v538
        %v919 = vmul.f32 %v907, %v537
        %v920 = vmul.f32 %v907, %v538
        %v921 = vmul.f32 %v908, %v537
        %v922 = vmul.f32 %v908, %v538
        %v923 = vmul.f32 %v909, %v537
        %v924 = vmul.f32 %v909, %v538
        %v925 = vmul.f32 %v910, %v537
        %v926 = vmul.f32 %v910, %v538
        %v927 = vadd.f32 %v887, %v911
        %v928 = vadd.f32 %v888, %v912
        %v929 = vadd.f32 %v889, %v913
        %v930 = vadd.f32 %v890, %v914
        %v931 = vadd.f32 %v891, %v915
        %v932 = vadd.f32 %v892, %v916
        %v933 = vadd.f32 %v893, %v917
        %v934 = vadd.f32 %v894, %v918
        %v935 = vadd.f32 %v895, %v919
        %v936 = vadd.f32 %v896, %v920
        %v937 = vadd.f32 %v897, %v921
        %v938 = vadd.f32 %v898, %v922
        %v939 = vadd.f32 %v899, %v923
        %v940 = vadd.f32 %v900, %v924
        %v941 = vadd.f32 %v901, %v925
        %v942 = vadd.f32 %v902, %v926
        %v943 = vperm.slane %v504, 2
        %v944 = vperm.slane %v506, 2
        %v945 = vperm.slane %v508, 2
        %v946 = vperm.slane %v510, 2
        %v947 = vperm.slane %v512, 2
        %v948 = vperm.slane %v514, 2
        %v949 = vperm.slane %v516, 2
        %v950 = vperm.slane %v518, 2
        %v951 = vmul.f32 %v943, %v539
        %v952 = vmul.f32 %v943, %v540
        %v953 = vmul.f32 %v944, %v539
        %v954 = vmul.f32 %v944, %v540
        %v955 = vmul.f32 %v945, %v539
        %v956 = vmul.f32 %v945, %v540
        %v957 = vmul.f32 %v946, %v539
        %v958 = vmul.f32 %v946, %v540
        %v959 = vmul.f32 %v947, %v539
        %v960 = vmul.f32 %v947, %v540
        %v961 = vmul.f32 %v948, %v539
        %v962 = vmul.f32 %v948, %v540
        %v963 = vmul.f32 %v949, %v539
        %v964 = vmul.f32 %v949, %v540
        %v965 = vmul.f32 %v950, %v539
        %v966 = vmul.f32 %v950, %v540
        %v967 = vadd.f32 %v927, %v951
        %v968 = vadd.f32 %v928, %v952
        %v969 = vadd.f32 %v929, %v953
        %v970 = vadd.f32 %v930, %v954
        %v971 = vadd.f32 %v931, %v955
        %v972 = vadd.f32 %v932, %v956
        %v973 = vadd.f32 %v933, %v957
        %v974 = vadd.f32 %v934, %v958
        %v975 = vadd.f32 %v935, %v959
        %v976 = vadd.f32 %v936, %v960
        %v977 = vadd.f32 %v937, %v961
        %v978 = vadd.f32 %v938, %v962
        %v979 = vadd.f32 %v939, %v963
        %v980 = vadd.f32 %v940, %v964
        %v981 = vadd.f32 %v941, %v965
        %v982 = vadd.f32 %v942, %v966
        %v983 = vperm.slane %v504, 3
        %v984 = vperm.slane %v506, 3
        %v985 = vperm.slane %v508, 3
        %v986 = vperm.slane %v510, 3
        %v987 = vperm.slane %v512, 3
        %v988 = vperm.slane %v514, 3
        %v989 = vperm.slane %v516, 3
        %v990 = vperm.slane %v518, 3
        %v991 = vmul.f32 %v983, %v541
        %v992 = vmul.f32 %v983, %v542
        %v993 = vmul.f32 %v984, %v541
        %v994 = vmul.f32 %v984, %v542
        %v995 = vmul.f32 %v985, %v541
        %v996 = vmul.f32 %v985, %v542
        %v997 = vmul.f32 %v986, %v541
        %v998 = vmul.f32 %v986, %v542
        %v999 = vmul.f32 %v987, %v541
        %v1000 = vmul.f32 %v987, %v542
        %v1001 = vmul.f32 %v988, %v541
        %v1002 = vmul.f32 %v988, %v542
        %v1003 = vmul.f32 %v989, %v541
        %v1004 = vmul.f32 %v989, %v542
        %v1005 = vmul.f32 %v990, %v541
        %v1006 = vmul.f32 %v990, %v542
        %v1007 = vadd.f32 %v967, %v991
        %v1008 = vadd.f32 %v968, %v992
        %v1009 = vadd.f32 %v969, %v993
        %v1010 = vadd.f32 %v970, %v994
        %v1011 = vadd.f32 %v971, %v995
        %v1012 = vadd.f32 %v972, %v996
        %v1013 = vadd.f32 %v973, %v997
        %v1014 = vadd.f32 %v974, %v998
        %v1015 = vadd.f32 %v975, %v999
        %v1016 = vadd.f32 %v976, %v1000
        %v1017 = vadd.f32 %v977, %v1001
        %v1018 = vadd.f32 %v978, %v1002
        %v1019 = vadd.f32 %v979, %v1003
        %v1020 = vadd.f32 %v980, %v1004
        %v1021 = vadd.f32 %v981, %v1005
        %v1022 = vadd.f32 %v982, %v1006
        %v1023 = vld [vmem:[%s4] sm:$0x1]
        %v1025 = vperm.slane %v1023, 0
        %v1027 = vmul.f32 %v1007, %v1025
        %v1028 = vmul.f32 %v1008, %v1025
        %v1029 = vmul.f32 %v1009, %v1025
        %v1030 = vmul.f32 %v1010, %v1025
        %v1031 = vmul.f32 %v1011, %v1025
        %v1032 = vmul.f32 %v1012, %v1025
        %v1033 = vmul.f32 %v1013, %v1025
        %v1034 = vmul.f32 %v1014, %v1025
        %v1035 = vmul.f32 %v1015, %v1025
        %v1036 = vmul.f32 %v1016, %v1025
        %v1037 = vmul.f32 %v1017, %v1025
        %v1038 = vmul.f32 %v1018, %v1025
        %v1039 = vmul.f32 %v1019, %v1025
        %v1040 = vmul.f32 %v1020, %v1025
        %v1041 = vmul.f32 %v1021, %v1025
        %v1042 = vmul.f32 %v1022, %v1025
        %v1043 = vld [vmem:[%s5] sm:$0x1]
        %v1045 = vperm.slane %v1043, 0
        %v1047 = vadd.f32 %v1027, %v1045
        %v1048 = vadd.f32 %v1028, %v1045
        %v1049 = vadd.f32 %v1029, %v1045
        %v1050 = vadd.f32 %v1030, %v1045
        %v1051 = vadd.f32 %v1031, %v1045
        %v1052 = vadd.f32 %v1032, %v1045
        %v1053 = vadd.f32 %v1033, %v1045
        %v1054 = vadd.f32 %v1034, %v1045
        %v1055 = vadd.f32 %v1035, %v1045
        %v1056 = vadd.f32 %v1036, %v1045
        %v1057 = vadd.f32 %v1037, %v1045
        %v1058 = vadd.f32 %v1038, %v1045
        %v1059 = vadd.f32 %v1039, %v1045
        %v1060 = vadd.f32 %v1040, %v1045
        %v1061 = vadd.f32 %v1041, %v1045
        %v1062 = vadd.f32 %v1042, %v1045
        %v1063 = vmax.f32 %v1047, 0.0
        %v1064 = vmax.f32 %v1048, 0.0
        %v1065 = vmax.f32 %v1049, 0.0
        %v1066 = vmax.f32 %v1050, 0.0
        %v1067 = vmax.f32 %v1051, 0.0
        %v1068 = vmax.f32 %v1052, 0.0
        %v1069 = vmax.f32 %v1053, 0.0
        %v1070 = vmax.f32 %v1054, 0.0
        %v1071 = vmax.f32 %v1055, 0.0
        %v1072 = vmax.f32 %v1056, 0.0
        %v1073 = vmax.f32 %v1057, 0.0
        %v1074 = vmax.f32 %v1058, 0.0
        %v1075 = vmax.f32 %v1059, 0.0
        %v1076 = vmax.f32 %v1060, 0.0
        %v1077 = vmax.f32 %v1061, 0.0
        %v1078 = vmax.f32 %v1062, 0.0
        %1079 = vst [vmem:[%s302] sm:$0xff] %v1063
        %1080 = vst [vmem:[%s302 + $0x8] sm:$0xff] %v1064
        %1081 = vst [vmem:[%s302 + $0x10] sm:$0xff] %v1065
        %1082 = vst [vmem:[%s302 + $0x18] sm:$0xff] %v1066
        %1083 = vst [vmem:[%s302 + $0x20] sm:$0xff] %v1067
        %1084 = vst [vmem:[%s302 + $0x28] sm:$0xff] %v1068
        %1085 = vst [vmem:[%s302 + $0x30] sm:$0xff] %v1069
        %1086 = vst [vmem:[%s302 + $0x38] sm:$0xff] %v1070
        %1087 = vst [vmem:[%s302 + $0x40] sm:$0xff] %v1071
        %1088 = vst [vmem:[%s302 + $0x48] sm:$0xff] %v1072
        %1089 = vst [vmem:[%s302 + $0x50] sm:$0xff] %v1073
        %1090 = vst [vmem:[%s302 + $0x58] sm:$0xff] %v1074
        %1091 = vst [vmem:[%s302 + $0x60] sm:$0xff] %v1075
        %1092 = vst [vmem:[%s302 + $0x68] sm:$0xff] %v1076
        %1093 = vst [vmem:[%s302 + $0x70] sm:$0xff] %v1077
        %1094 = vst [vmem:[%s302 + $0x78] sm:$0xff] %v1078
        %s1095 = sand.u32 %s185, 1
        %s1096 = scalar_lea.sflag [#allocation3], %s1095
        %s1097 = sand.u32 %s185, 1
        %s1098 = smul.addr %s1097, 128
        %s1099 = scalar_lea.vmem [#allocation2], %s1098
        // Predicated region
        $region45: #{pyramid_pooling_forward.3} parent=43 // pred_check
          %p1100 = pneg %p195
        $region46: #{pyramid_pooling_forward.3} parent=43 // pred_check_branch
          %1102 = sbr.rel (%p1100) target = $region48
        $region47: #{pyramid_pooling_forward.3} parent=43 // pred_region
          %s1103 = smul.u32 8, %s25
          %1105 = vsyncadd %s1096, 0
          %s1106 = smul.addr %s1103, 2
          %s1107 = smul.addr %s24, 32
          %s1108 = sadd.s32 %s1106, %s1107
          %s1109 = smul.addr %s1108, 8
          %s1110 = scalar_lea.hbm %s6, %s1109
          %s1111 = sshll.u32 %s1099, 4
          %s1112 = int_to_ptr.vmem [resolvable:$true] %s1111
          %s1113 = sshll.u32 %s1110, 4
          %s1114 = int_to_ptr.hbm [resolvable:$true] %s1113
          %1119 = dma.vmem_to_hbm [thread:$0]  %s1112, 2048, %s1114, %s1096, 128, 128, 8
        $region48: #{pyramid_pooling_forward.3} parent=43 // pred_fallthru
          _
      $region44: #{pyramid_pooling_forward.3} parent=5 // pred_fallthru
        _
      %p1120 = scmp.le.s32.totalorder 2, %s15
      // Predicated region
      $region49: #{pyramid_pooling_forward.3} parent=5 // pred_check
        %p1121 = pneg %p1120
      $region50: #{pyramid_pooling_forward.3} parent=5 // pred_check_branch
        %1123 = sbr.rel (%p1121) target = $region52
      $region51: #{pyramid_pooling_forward.3} parent=5 // pred_region
        %s1124 = ssub.s32 %s15, 2
        // Predicated region
        $region53: #{pyramid_pooling_forward.3} parent=51 // pred_check
          %p1125 = pneg %p201
        $region54: #{pyramid_pooling_forward.3} parent=51 // pred_check_branch
          %1127 = sbr.rel (%p1125) target = $region56
        $region55: #{pyramid_pooling_forward.3} parent=51 // pred_region
          %s1128 = sand.u32 %s186, 1
          %s1129 = scalar_lea.sflag [#allocation3], %s1128
          %s1130 = sand.u32 %s186, 1
          %s1131 = smul.addr %s1130, 128
          %s1132 = scalar_lea.vmem [#allocation2], %s1131
          %1134 = dma.done %s1129, 2048
        $region56: #{pyramid_pooling_forward.3} parent=51 // pred_fallthru
          _
      $region52: #{pyramid_pooling_forward.3} parent=5 // pred_fallthru
        _
    $region6: #{pyramid_pooling_forward.3} parent=1 // loop_footer
      %s19 = sadd.s32 1, %s15
    $region7: #{pyramid_pooling_forward.3} parent=1 // loop_footer_branch
      %14 = sbr.rel target = $region3
    $region8: #{pyramid_pooling_forward.3} parent=1 // loop_exit
      _
    %1135 = vsyncpa [#allocation3], 1
    %s1136 = scalar_lea.sflag [#allocation3], 1
    %1137 = vsyncpa %s1136, 1

</llo_original>
